<compile_context>
chip_gen: v5e
topology: v5e:2x2
jax: 0.10.0
libtpu: 0.0.40
codegen_flags: <defaults>
</compile_context>

<pallas_src>
import functools

import jax
import jax.numpy as jnp
from jax import lax
from jax.experimental import pallas as pl
from jax.experimental.pallas import tpu as pltpu


def _mil_kernel(n_valid, L, nonlin_dtype,
                v_ref, wvu_ref, bvu_ref, ww_ref, bw_ref, wc_ref, bc_ref,
                yprob_ref, inst_ref,
                m_ref, l_ref, acc_ref):
    i = pl.program_id(0)
    tile_n = v_ref.shape[0]

    @pl.when(i == 0)
    def _init():
        m_ref[...] = jnp.full(m_ref.shape, -jnp.inf, jnp.float32)
        l_ref[...] = jnp.zeros(l_ref.shape, jnp.float32)
        acc_ref[...] = jnp.zeros(acc_ref.shape, jnp.float32)

    # Zero-mask the ragged tail rows of the last tile: out-of-bounds rows of a
    # boundary block hold unspecified data, and 0-rows keep the pooling matmul
    # NaN-safe (VPU select, hides under MXU/EUP).
    row_ok = (i * tile_n
              + lax.broadcasted_iota(jnp.int32, (tile_n, 1), 0)) < n_valid
    v_f32 = jnp.where(row_ok, v_ref[...], 0.0)                # [TILE_N, nf] f32
    v_bf16 = v_f32.astype(jnp.bfloat16)

    # Fused attention_V / attention_U projection: one bf16 MXU matmul, f32 acc.
    proj = jnp.dot(v_bf16, wvu_ref[...],
                   preferred_element_type=jnp.float32) + bvu_ref[...]  # [TILE_N, 2L]

    # Nonlinearities on the EUP (bf16 on v6e/v7x, f32 on v5e).  Sigmoid is
    # rewritten via tanh: sigmoid(x) = 0.5 * (1 + tanh(0.5 * x)).
    proj_v = proj[:, :L].astype(nonlin_dtype)
    proj_u = proj[:, L:].astype(nonlin_dtype)
    half = jnp.asarray(0.5, nonlin_dtype)
    one = jnp.asarray(1.0, nonlin_dtype)
    a_v = jnp.tanh(proj_v)
    a_u = half * (one + jnp.tanh(half * proj_u))
    gated = a_v * a_u                                          # [TILE_N, L]

    # attention_W: scores directly in lane-dense row form [1, TILE_N]
    # (contract the L axis of both operands, flash-attention q@k^T style).
    scores = lax.dot_general(
        ww_ref[...].astype(gated.dtype), gated, (((1,), (1,)), ((), ())),
        preferred_element_type=jnp.float32) + bw_ref[0]        # [1, TILE_N]

    # Mask the padded tail columns of the bag.
    col_ok = (i * tile_n
              + lax.broadcasted_iota(jnp.int32, scores.shape, 1)) < n_valid
    scores = jnp.where(col_ok, scores, -jnp.inf)

    # Per-instance sigmoid scores, lane-dense store.
    inst_ref[...] = jax.nn.sigmoid(scores).astype(inst_ref.dtype)

    # Online softmax over the bag + attention-weighted feature pooling.
    m_old = m_ref[...]                                         # (1, 1)
    m_new = jnp.maximum(m_old, jnp.max(scores, axis=-1, keepdims=True))
    alpha = jnp.exp(m_old - m_new)
    p = jnp.exp(scores - m_new)                                # [1, TILE_N] f32
    l_ref[...] = alpha * l_ref[...] + jnp.sum(p, axis=-1, keepdims=True)
    # Pooling kept in f32 (tiny vs. the projection matmul) so the softmax
    # numerator and denominator share precision.
    acc_ref[...] = alpha * acc_ref[...] + jnp.dot(
        p, v_f32, preferred_element_type=jnp.float32)
    m_ref[...] = m_new

    @pl.when(i == pl.num_programs(0) - 1)
    def _finalize():
        inv_l = pl.reciprocal(l_ref[...], approx=True)         # EUP slot
        weighted = acc_ref[...] * inv_l                        # [1, nf] f32
        logits = jnp.dot(weighted, wc_ref[...],
                         preferred_element_type=jnp.float32) + bc_ref[...]
        yprob_ref[...] = jax.nn.sigmoid(logits).astype(yprob_ref.dtype)


def _round_up(x, m):
    return ((x + m - 1) // m) * m


def _has_bf16_vector_units():
    """bf16 EUP/VPU exist on v6e / v7x; keep f32 nonlinearities elsewhere."""
    try:
        kind = jax.devices()[0].device_kind.lower()
    except Exception:
        return False
    return any(tag in kind for tag in ("v6", "v7", "7x"))


def linear_classifier_forward(v, params, *, tile_n=512, nonlin_dtype=None):
    """v: [N, nf] float32. Returns (Y_prob [1, C], instance_scores [N])."""
    N, nf = v.shape
    L = params["w_v"].shape[1]
    C = params["w_c"].shape[1]

    if nonlin_dtype is None:
        nonlin_dtype = jnp.bfloat16 if _has_bf16_vector_units() else jnp.float32

    # Clamp the tile to the (lane-rounded) bag size so small bags do not pay
    # for a full 512-row tile of projection compute; keep it 128-aligned so
    # the instance-score store stays lane-dense.
    tile_n = max(128, min(tile_n, _round_up(N, 128)))
    num_tiles = pl.cdiv(N, tile_n)
    n_pad = num_tiles * tile_n

    # Kernel-side weight packing (tiny arrays): fuse the V/U weights into one
    # [nf, 2L] bf16 matrix, attention_W as a [1, L] f32 row with its bias as an
    # SMEM scalar, classifier kept in f32.  v itself is streamed as f32 with
    # NO wrapper-side pad/cast pass.
    w_vu = jnp.concatenate([params["w_v"], params["w_u"]], axis=1).astype(jnp.bfloat16)
    b_vu = jnp.concatenate([params["b_v"], params["b_u"]], axis=1)
    w_w = params["w_w"].reshape(1, L)
    b_w = params["b_w"].reshape(1)
    w_c = params["w_c"]
    b_c = params["b_c"]

    kernel = functools.partial(_mil_kernel, N, L, nonlin_dtype)
    y_prob, inst = pl.pallas_call(
        kernel,
        grid=(num_tiles,),
        in_specs=[
            pl.BlockSpec((tile_n, nf), lambda i: (i, 0)),        # v (streamed f32)
            pl.BlockSpec((nf, 2 * L), lambda i: (0, 0)),         # w_vu (resident)
            pl.BlockSpec((1, 2 * L), lambda i: (0, 0)),          # b_vu
            pl.BlockSpec((1, L), lambda i: (0, 0)),              # w_w row
            pl.BlockSpec(memory_space=pltpu.MemorySpace.SMEM),   # b_w scalar
            pl.BlockSpec((nf, C), lambda i: (0, 0)),             # w_c
            pl.BlockSpec((1, C), lambda i: (0, 0)),              # b_c
        ],
        out_specs=(
            pl.BlockSpec((1, C), lambda i: (0, 0)),              # Y_prob
            pl.BlockSpec((1, tile_n), lambda i: (0, i)),         # instance scores
        ),
        out_shape=(
            jax.ShapeDtypeStruct((1, C), jnp.float32),
            jax.ShapeDtypeStruct((1, n_pad), jnp.float32),
        ),
        scratch_shapes=[
            pltpu.VMEM((1, 1), jnp.float32),     # running max  m
            pltpu.VMEM((1, 1), jnp.float32),     # running sum  l
            pltpu.VMEM((1, nf), jnp.float32),    # weighted-feature accumulator
        ],
        compiler_params=pltpu.CompilerParams(
            dimension_semantics=("arbitrary",),          # online-softmax carry axis
            vmem_limit_bytes=32 * 1024 * 1024,           # safe on v7x's 64 MiB VMEM
        ),
    )(v, w_vu, b_vu, w_w, b_w, w_c, b_c)

    # torch.sigmoid(instance_scores.squeeze()) -> shape [N]
    return y_prob, inst[0, :N]


def init_params(key, nf, num_classes=1, L=256):
    """PyTorch-Linear-style uniform(+-1/sqrt(fan_in)) init.
    Weights stored as [in, out] (transposed vs torch's [out, in])."""
    ks = jax.random.split(key, 8)

    def lin(kw, kb, fan_in, fan_out):
        bound = 1.0 / jnp.sqrt(fan_in)
        w = jax.random.uniform(kw, (fan_in, fan_out), jnp.float32, -bound, bound)
        b = jax.random.uniform(kb, (1, fan_out), jnp.float32, -bound, bound)
        return w, b

    w_v, b_v = lin(ks[0], ks[1], nf, L)
    w_u, b_u = lin(ks[2], ks[3], nf, L)
    w_w, b_w = lin(ks[4], ks[5], L, 1)
    w_c, b_c = lin(ks[6], ks[7], nf, num_classes)
    # NOTE: self.fc in __init__ is unused in forward(), so it is not created.
    return dict(w_v=w_v, b_v=b_v, w_u=w_u, b_u=b_u,
                w_w=w_w, b_w=b_w, w_c=w_c, b_c=b_c)


def _reference_forward(v, p):
    a_v = jnp.tanh(v @ p["w_v"] + p["b_v"])
    a_u = jax.nn.sigmoid(v @ p["w_u"] + p["b_u"])
    scores = (a_v * a_u) @ p["w_w"] + p["b_w"]              # [N, 1]
    attn = jax.nn.softmax(scores.T, axis=1)                 # [1, N]
    weighted = attn @ v                                      # [1, nf]
    y_prob = jax.nn.sigmoid(weighted @ p["w_c"] + p["b_c"])
    return y_prob, jax.nn.sigmoid(scores.squeeze())


if __name__ == "__main__":
    # Small but lane-aligned shapes; N not a tile multiple to exercise the
    # in-kernel ragged-tail masking.
    N, nf, L, C = 300, 128, 256, 1

    key = jax.random.PRNGKey(0)
    k_v, k_p = jax.random.split(key)
    v = jax.random.normal(k_v, (N, nf), jnp.float32)
    params = init_params(k_p, nf, num_classes=C, L=L)

    y_prob, inst_scores = linear_classifier_forward(v, params)
    jax.block_until_ready((y_prob, inst_scores))

    y_ref, inst_ref = _reference_forward(v, params)
    assert y_prob.shape == (1, C) and inst_scores.shape == (N,)
    # bf16 MXU operands (and bf16 EUP on v6e/v7x) -> looser tolerance than f32.
    assert jnp.allclose(y_prob, y_ref, atol=2e-2), (y_prob, y_ref)
    assert jnp.allclose(inst_scores, inst_ref, atol=2e-2)

    print("KERNEL_OK")
</pallas_src>

<mosaic_0001>
module attributes {stable_mosaic.version = 11 : i64} {
  func.func @_mil_kernel(%arg0: i32, %arg1: memref<384x128xf32, #tpu.memory_space<vmem>>, %arg2: memref<128x512xbf16, #tpu.memory_space<vmem>>, %arg3: memref<1x512xf32, #tpu.memory_space<vmem>>, %arg4: memref<1x256xf32, #tpu.memory_space<vmem>>, %arg5: memref<1xf32, #tpu.memory_space<smem>>, %arg6: memref<128x1xf32, #tpu.memory_space<vmem>>, %arg7: memref<1x1xf32, #tpu.memory_space<vmem>>, %arg8: memref<1x1xf32, #tpu.memory_space<vmem>>, %arg9: memref<1x384xf32, #tpu.memory_space<vmem>>, %arg10: memref<1x1xf32, #tpu.memory_space<vmem>>, %arg11: memref<1x1xf32, #tpu.memory_space<vmem>>, %arg12: memref<1x128xf32, #tpu.memory_space<vmem>>) attributes {dimension_semantics = [#tpu.dimension_semantics<arbitrary>], iteration_bounds = array<i64: 1>, scalar_prefetch = 0 : i64, scratch_operands = 3 : i64, tpu.core_type = #tpu.core_type<tc>, window_params = [{transform_indices = @transform_0, window_bounds = array<i64: 384, 128>}, {pipeline_mode = #tpu.pipeline_mode<synchronous>, transform_indices = @transform_1, window_bounds = array<i64: 128, 512>}, {pipeline_mode = #tpu.pipeline_mode<synchronous>, transform_indices = @transform_2, window_bounds = array<i64: 1, 512>}, {pipeline_mode = #tpu.pipeline_mode<synchronous>, transform_indices = @transform_3, window_bounds = array<i64: 1, 256>}, {transform_indices = @transform_4, window_bounds = array<i64: 1>}, {pipeline_mode = #tpu.pipeline_mode<synchronous>, transform_indices = @transform_5, window_bounds = array<i64: 128, 1>}, {pipeline_mode = #tpu.pipeline_mode<synchronous>, transform_indices = @transform_6, window_bounds = array<i64: 1, 1>}, {pipeline_mode = #tpu.pipeline_mode<synchronous>, transform_indices = @transform_7, window_bounds = array<i64: 1, 1>}, {transform_indices = @transform_8, window_bounds = array<i64: 1, 384>}]} {
    %c0_i32 = arith.constant 0 : i32
    %0 = arith.cmpi eq, %arg0, %c0_i32 : i32
    %1 = arith.extui %0 : i1 to i32
    %c0_i32_0 = arith.constant 0 : i32
    %2 = arith.cmpi ne, %1, %c0_i32_0 : i32
    scf.if %2 {
      %cst_37 = arith.constant 0xFF800000 : f32
      %75 = vector.broadcast %cst_37 : f32 to vector<1x1xf32>
      %c0_38 = arith.constant 0 : index
      %c0_39 = arith.constant 0 : index
      %76 = vector.load %arg10[%c0_38, %c0_39] : memref<1x1xf32, #tpu.memory_space<vmem>>, vector<1x1xf32>
      tpu.vector_store %arg10[%c0_38, %c0_39], %75 {strides = array<i32>} : memref<1x1xf32, #tpu.memory_space<vmem>>, vector<1x1xf32>,
      %cst_40 = arith.constant 0.000000e+00 : f32
      %77 = vector.broadcast %cst_40 : f32 to vector<1x1xf32>
      %c0_41 = arith.constant 0 : index
      %c0_42 = arith.constant 0 : index
      %78 = vector.load %arg11[%c0_41, %c0_42] : memref<1x1xf32, #tpu.memory_space<vmem>>, vector<1x1xf32>
      tpu.vector_store %arg11[%c0_41, %c0_42], %77 {strides = array<i32>} : memref<1x1xf32, #tpu.memory_space<vmem>>, vector<1x1xf32>,
      %cst_43 = arith.constant 0.000000e+00 : f32
      %79 = vector.broadcast %cst_43 : f32 to vector<1x128xf32>
      %c0_44 = arith.constant 0 : index
      %c0_45 = arith.constant 0 : index
      %80 = vector.load %arg12[%c0_44, %c0_45] : memref<1x128xf32, #tpu.memory_space<vmem>>, vector<1x128xf32>
      tpu.vector_store %arg12[%c0_44, %c0_45], %79 {strides = array<i32>} : memref<1x128xf32, #tpu.memory_space<vmem>>, vector<1x128xf32>,
    } else {
    }
    %c384_i32 = arith.constant 384 : i32
    %3 = arith.muli %arg0, %c384_i32 : i32
    %4 = tpu.iota {dimensions = array<i32: 0>} : vector<384x1xi32>
    %5 = vector.broadcast %3 : i32 to vector<384x1xi32>
    %6 = arith.addi %5, %4 : vector<384x1xi32>
    %c300_i32 = arith.constant 300 : i32
    %7 = vector.broadcast %c300_i32 : i32 to vector<384x1xi32>
    %8 = arith.cmpi slt, %6, %7 : vector<384x1xi32>
    %c0 = arith.constant 0 : index
    %c0_1 = arith.constant 0 : index
    %9 = vector.load %arg1[%c0, %c0_1] : memref<384x128xf32, #tpu.memory_space<vmem>>, vector<384x128xf32>
    %cst = arith.constant 0.000000e+00 : f32
    %10 = vector.shape_cast %8 : vector<384x1xi1> to vector<384x1xi1>
    %11 = vector.broadcast %10 : vector<384x1xi1> to vector<384x128xi1>
    %12 = vector.broadcast %cst : f32 to vector<384x128xf32>
    %13 = arith.select %11, %9, %12 : vector<384x128xi1>, vector<384x128xf32>
    %14 = arith.truncf %13 : vector<384x128xf32> to vector<384x128xbf16>
    %c0_2 = arith.constant 0 : index
    %c0_3 = arith.constant 0 : index
    %15 = vector.load %arg2[%c0_2, %c0_3] : memref<128x512xbf16, #tpu.memory_space<vmem>>, vector<128x512xbf16>
    %cst_4 = arith.constant dense<0.000000e+00> : vector<384x512xf32>
    %16 = tpu.matmul %14, %15, %cst_4 {dimension_numbers = #tpu.dot_dimension_numbers<[1], [0], [0], [1], [0, 0, 1, 1], [], []>} : vector<384x128xbf16>, vector<128x512xbf16>, vector<384x512xf32> -> vector<384x512xf32>
    %c0_5 = arith.constant 0 : index
    %c0_6 = arith.constant 0 : index
    %17 = vector.load %arg3[%c0_5, %c0_6] : memref<1x512xf32, #tpu.memory_space<vmem>>, vector<1x512xf32>
    %18 = vector.broadcast %17 : vector<1x512xf32> to vector<384x512xf32>
    %19 = arith.addf %16, %18 : vector<384x512xf32>
    %20 = vector.extract_strided_slice %19 {offsets = [0, 0], sizes = [384, 256], strides = [1, 1]} : vector<384x512xf32> to vector<384x256xf32>
    %21 = vector.extract_strided_slice %19 {offsets = [0, 256], sizes = [384, 256], strides = [1, 1]} : vector<384x512xf32> to vector<384x256xf32>
    %22 = math.tanh %20 : vector<384x256xf32>
    %cst_7 = arith.constant 5.000000e-01 : f32
    %23 = vector.broadcast %cst_7 : f32 to vector<384x256xf32>
    %24 = arith.mulf %23, %21 : vector<384x256xf32>
    %25 = math.tanh %24 : vector<384x256xf32>
    %cst_8 = arith.constant 1.000000e+00 : f32
    %26 = vector.broadcast %cst_8 : f32 to vector<384x256xf32>
    %27 = arith.addf %26, %25 : vector<384x256xf32>
    %cst_9 = arith.constant 5.000000e-01 : f32
    %28 = vector.broadcast %cst_9 : f32 to vector<384x256xf32>
    %29 = arith.mulf %28, %27 : vector<384x256xf32>
    %30 = arith.mulf %22, %29 : vector<384x256xf32>
    %c0_10 = arith.constant 0 : index
    %c0_11 = arith.constant 0 : index
    %31 = vector.load %arg4[%c0_10, %c0_11] : memref<1x256xf32, #tpu.memory_space<vmem>>, vector<1x256xf32>
    %cst_12 = arith.constant dense<0.000000e+00> : vector<1x384xf32>
    %32 = tpu.matmul %31, %30, %cst_12 {dimension_numbers = #tpu.dot_dimension_numbers<[1], [1], [0], [0], [0, 0, 1, 0], [], []>} : vector<1x256xf32>, vector<384x256xf32>, vector<1x384xf32> -> vector<1x384xf32>
    %c0_13 = arith.constant 0 : index
    %33 = memref.load %arg5[%c0_13] : memref<1xf32, #tpu.memory_space<smem>>
    %34 = vector.broadcast %33 : f32 to vector<1x384xf32>
    %35 = arith.addf %32, %34 : vector<1x384xf32>
    %c384_i32_14 = arith.constant 384 : i32
    %36 = arith.muli %arg0, %c384_i32_14 : i32
    %37 = tpu.iota {dimensions = array<i32: 1>} : vector<1x384xi32>
    %38 = vector.broadcast %36 : i32 to vector<1x384xi32>
    %39 = arith.addi %38, %37 : vector<1x384xi32>
    %c300_i32_15 = arith.constant 300 : i32
    %40 = vector.broadcast %c300_i32_15 : i32 to vector<1x384xi32>
    %41 = arith.cmpi slt, %39, %40 : vector<1x384xi32>
    %cst_16 = arith.constant 0xFF800000 : f32
    %42 = vector.broadcast %cst_16 : f32 to vector<1x384xf32>
    %43 = arith.select %41, %35, %42 : vector<1x384xi1>, vector<1x384xf32>
    %44 = arith.negf %43 : vector<1x384xf32>
    %45 = math.exp %44 : vector<1x384xf32>
    %cst_17 = arith.constant 1.000000e+00 : f32
    %46 = vector.broadcast %cst_17 : f32 to vector<1x384xf32>
    %47 = arith.addf %46, %45 : vector<1x384xf32>
    %48 = arith.divf %46, %47 : vector<1x384xf32>
    %c0_18 = arith.constant 0 : index
    %c0_19 = arith.constant 0 : index
    %49 = vector.load %arg9[%c0_18, %c0_19] : memref<1x384xf32, #tpu.memory_space<vmem>>, vector<1x384xf32>
    tpu.vector_store %arg9[%c0_18, %c0_19], %48 {strides = array<i32>} : memref<1x384xf32, #tpu.memory_space<vmem>>, vector<1x384xf32>,
    %c0_20 = arith.constant 0 : index
    %c0_21 = arith.constant 0 : index
    %50 = vector.load %arg10[%c0_20, %c0_21] : memref<1x1xf32, #tpu.memory_space<vmem>>, vector<1x1xf32>
    %cst_22 = arith.constant dense<0xFF800000> : vector<1xf32>
    %51 = vector.multi_reduction <maximumf>, %43, %cst_22 [1] : vector<1x384xf32> to vector<1xf32>
    %52 = vector.shape_cast %51 : vector<1xf32> to vector<1x1xf32>
    %53 = arith.maximumf %50, %52 : vector<1x1xf32>
    %54 = arith.subf %50, %53 : vector<1x1xf32>
    %55 = math.exp %54 : vector<1x1xf32>
    %56 = vector.broadcast %53 : vector<1x1xf32> to vector<1x384xf32>
    %57 = arith.subf %43, %56 : vector<1x384xf32>
    %58 = math.exp %57 : vector<1x384xf32>
    %c0_23 = arith.constant 0 : index
    %c0_24 = arith.constant 0 : index
    %59 = vector.load %arg11[%c0_23, %c0_24] : memref<1x1xf32, #tpu.memory_space<vmem>>, vector<1x1xf32>
    %60 = arith.mulf %55, %59 : vector<1x1xf32>
    %cst_25 = arith.constant dense<0.000000e+00> : vector<1xf32>
    %61 = vector.multi_reduction <add>, %58, %cst_25 [1] : vector<1x384xf32> to vector<1xf32>
    %62 = vector.shape_cast %61 : vector<1xf32> to vector<1x1xf32>
    %63 = arith.addf %60, %62 : vector<1x1xf32>
    %c0_26 = arith.constant 0 : index
    %c0_27 = arith.constant 0 : index
    %64 = vector.load %arg11[%c0_26, %c0_27] : memref<1x1xf32, #tpu.memory_space<vmem>>, vector<1x1xf32>
    tpu.vector_store %arg11[%c0_26, %c0_27], %63 {strides = array<i32>} : memref<1x1xf32, #tpu.memory_space<vmem>>, vector<1x1xf32>,
    %c0_28 = arith.constant 0 : index
    %c0_29 = arith.constant 0 : index
    %65 = vector.load %arg12[%c0_28, %c0_29] : memref<1x128xf32, #tpu.memory_space<vmem>>, vector<1x128xf32>
    %66 = vector.broadcast %55 : vector<1x1xf32> to vector<1x128xf32>
    %67 = arith.mulf %66, %65 : vector<1x128xf32>
    %cst_30 = arith.constant dense<0.000000e+00> : vector<1x128xf32>
    %68 = tpu.matmul %58, %13, %cst_30 {dimension_numbers = #tpu.dot_dimension_numbers<[1], [0], [0], [1], [0, 0, 1, 1], [], []>} : vector<1x384xf32>, vector<384x128xf32>, vector<1x128xf32> -> vector<1x128xf32>
    %69 = arith.addf %67, %68 : vector<1x128xf32>
    %c0_31 = arith.constant 0 : index
    %c0_32 = arith.constant 0 : index
    %70 = vector.load %arg12[%c0_31, %c0_32] : memref<1x128xf32, #tpu.memory_space<vmem>>, vector<1x128xf32>
    tpu.vector_store %arg12[%c0_31, %c0_32], %69 {strides = array<i32>} : memref<1x128xf32, #tpu.memory_space<vmem>>, vector<1x128xf32>,
    %c0_33 = arith.constant 0 : index
    %c0_34 = arith.constant 0 : index
    %71 = vector.load %arg10[%c0_33, %c0_34] : memref<1x1xf32, #tpu.memory_space<vmem>>, vector<1x1xf32>
    tpu.vector_store %arg10[%c0_33, %c0_34], %53 {strides = array<i32>} : memref<1x1xf32, #tpu.memory_space<vmem>>, vector<1x1xf32>,
    %c0_i32_35 = arith.constant 0 : i32
    %72 = arith.cmpi eq, %arg0, %c0_i32_35 : i32
    %73 = arith.extui %72 : i1 to i32
    %c0_i32_36 = arith.constant 0 : i32
    %74 = arith.cmpi ne, %73, %c0_i32_36 : i32
    scf.if %74 {
      %c0_37 = arith.constant 0 : index
      %c0_38 = arith.constant 0 : index
      %75 = vector.load %arg11[%c0_37, %c0_38] : memref<1x1xf32, #tpu.memory_space<vmem>>, vector<1x1xf32>
      %76 = tpu.reciprocal %75 {approx = true} : vector<1x1xf32> -> vector<1x1xf32>
      %c0_39 = arith.constant 0 : index
      %c0_40 = arith.constant 0 : index
      %77 = vector.load %arg12[%c0_39, %c0_40] : memref<1x128xf32, #tpu.memory_space<vmem>>, vector<1x128xf32>
      %78 = vector.broadcast %76 : vector<1x1xf32> to vector<1x128xf32>
      %79 = arith.mulf %77, %78 : vector<1x128xf32>
      %c0_41 = arith.constant 0 : index
      %c0_42 = arith.constant 0 : index
      %80 = vector.load %arg6[%c0_41, %c0_42] : memref<128x1xf32, #tpu.memory_space<vmem>>, vector<128x1xf32>
      %cst_43 = arith.constant dense<0.000000e+00> : vector<1x1xf32>
      %81 = tpu.matmul %79, %80, %cst_43 {dimension_numbers = #tpu.dot_dimension_numbers<[1], [0], [0], [1], [0, 0, 1, 1], [], []>} : vector<1x128xf32>, vector<128x1xf32>, vector<1x1xf32> -> vector<1x1xf32>
      %c0_44 = arith.constant 0 : index
      %c0_45 = arith.constant 0 : index
      %82 = vector.load %arg7[%c0_44, %c0_45] : memref<1x1xf32, #tpu.memory_space<vmem>>, vector<1x1xf32>
      %83 = arith.addf %81, %82 : vector<1x1xf32>
      %84 = arith.negf %83 : vector<1x1xf32>
      %85 = math.exp %84 : vector<1x1xf32>
      %cst_46 = arith.constant 1.000000e+00 : f32
      %86 = vector.broadcast %cst_46 : f32 to vector<1x1xf32>
      %87 = arith.addf %86, %85 : vector<1x1xf32>
      %88 = arith.divf %86, %87 : vector<1x1xf32>
      %c0_47 = arith.constant 0 : index
      %c0_48 = arith.constant 0 : index
      %89 = vector.load %arg8[%c0_47, %c0_48] : memref<1x1xf32, #tpu.memory_space<vmem>>, vector<1x1xf32>
      tpu.vector_store %arg8[%c0_47, %c0_48], %88 {strides = array<i32>} : memref<1x1xf32, #tpu.memory_space<vmem>>, vector<1x1xf32>,
    } else {
    }
    return
  }
  func.func @transform_0(%arg0: i32) -> (i32, i32) {
    %c0_i32 = arith.constant 0 : i32
    %c0_i32_0 = arith.constant 0 : i32
    return %arg0, %c0_i32 : i32, i32
  }
  func.func @transform_1(%arg0: i32) -> (i32, i32) {
    %c0_i32 = arith.constant 0 : i32
    %c0_i32_0 = arith.constant 0 : i32
    %c0_i32_1 = arith.constant 0 : i32
    return %c0_i32, %c0_i32_0 : i32, i32
  }
  func.func @transform_2(%arg0: i32) -> (i32, i32) {
    %c0_i32 = arith.constant 0 : i32
    %c0_i32_0 = arith.constant 0 : i32
    %c0_i32_1 = arith.constant 0 : i32
    return %c0_i32, %c0_i32_0 : i32, i32
  }
  func.func @transform_3(%arg0: i32) -> (i32, i32) {
    %c0_i32 = arith.constant 0 : i32
    %c0_i32_0 = arith.constant 0 : i32
    %c0_i32_1 = arith.constant 0 : i32
    return %c0_i32, %c0_i32_0 : i32, i32
  }
  func.func @transform_4(%arg0: i32) -> i32 {
    %c0_i32 = arith.constant 0 : i32
    %c0_i32_0 = arith.constant 0 : i32
    return %c0_i32 : i32
  }
  func.func @transform_5(%arg0: i32) -> (i32, i32) {
    %c0_i32 = arith.constant 0 : i32
    %c0_i32_0 = arith.constant 0 : i32
    %c0_i32_1 = arith.constant 0 : i32
    return %c0_i32, %c0_i32_0 : i32, i32
  }
  func.func @transform_6(%arg0: i32) -> (i32, i32) {
    %c0_i32 = arith.constant 0 : i32
    %c0_i32_0 = arith.constant 0 : i32
    %c0_i32_1 = arith.constant 0 : i32
    return %c0_i32, %c0_i32_0 : i32, i32
  }
  func.func @transform_7(%arg0: i32) -> (i32, i32) {
    %c0_i32 = arith.constant 0 : i32
    %c0_i32_0 = arith.constant 0 : i32
    %c0_i32_1 = arith.constant 0 : i32
    return %c0_i32, %c0_i32_0 : i32, i32
  }
  func.func @transform_8(%arg0: i32) -> (i32, i32) {
    %c0_i32 = arith.constant 0 : i32
    %c0_i32_0 = arith.constant 0 : i32
    return %c0_i32, %arg0 : i32, i32
  }
}

</mosaic_0001>

<llo_original>
// kernel: tpu_custom_call.1
$region0: #{tpu_custom_call.1}
  #allocation0 [shape = 'u32[]', space=smem, size = 0x4, offset = 0x4, fixed_abs, tag = 'smem constant byte address 0x4 - core index']
  #allocation1 [shape = 'u32[72,128]{1,0:T(1,128)}', space=vmem, size = 0x9000, scoped, tag = 'internal scratch']
  #allocation2 [shape = 'f32[1,1]{1,0:T(1,128)}', space=vmem, size = 0x200, scoped, tag = 'scratch operand']
  #allocation3 [shape = 'f32[1,1]{1,0:T(1,128)}', space=vmem, size = 0x200, scoped, tag = 'scratch operand']
  #allocation4 [shape = 'f32[1,128]{1,0:T(1,128)}', space=vmem, size = 0x200, scoped, tag = 'scratch operand']
  #allocation5 [shape = 'f32[1]{0:T(128)S(6)}', space=smem, size = 0x200, scoped, tag = 'scoped memory for tpu_custom_call.1']
  #allocation6 [shape = 'f32[1,1]{1,0:T(1,128)S(1)}', space=vmem, size = 0x200, scoped, tag = 'scoped memory for tpu_custom_call.1']
  %s0 = inlined_call_operand.hbm [shape: f32[300,128], index: 0, kind: input, shape index: {}]
  %s1 = inlined_call_operand.hbm [shape: bf16[128,512], index: 1, kind: input, shape index: {}]
  %s2 = inlined_call_operand.vmem [shape: f32[1,512], index: 2, kind: input, shape index: {}]
  %s3 = inlined_call_operand.vmem [shape: f32[1,256], index: 3, kind: input, shape index: {}]
  %s4 = inlined_call_operand.<no memory space> [shape: f32[1], index: 4, kind: input, shape index: {}]
  %s5 = inlined_call_operand.vmem [shape: f32[128,1], index: 5, kind: input, shape index: {}]
  %s6 = inlined_call_operand.<no memory space> [shape: f32[1,1], index: 6, kind: input, shape index: {}]
  %s7 = inlined_call_operand.hbm [shape: f32[1,1], index: 7, kind: output, shape index: {0}]
  %s8 = inlined_call_operand.hbm [shape: f32[1,384], index: 8, kind: output, shape index: {1}]
  %9 = xla_tuple %s7, %s8
  %s10 = sld [smem:[#allocation0]]
  $region62: #{tpu_custom_call.1} parent=0
    _
  %s12 = ssub.s32 1, %s10
  %s13 = scalar_select 0, %s12, %s10
  %14 = sst [smem:[#allocation5]] %s4
  %v15 = vstv %s6
  %16 = vst [vmem:[#allocation6] sm:$0x1] %v15
  $region1: #{tpu_custom_call.1} parent=0
    #allocation7 [shape = 'u8[196608]{0}', space=vmem, size = 0x30000, scoped, tag = 'input window, operand 0, single buffered']
    #allocation8 [shape = 's32[1]{0}', space=sflag, size = 0x4, scoped, tag = 'scoped memory for tpu_custom_call.1']
    #allocation9 [shape = 's32[1]{0}', space=sflag, size = 0x4, scoped, tag = 'scoped memory for tpu_custom_call.1']
    #allocation10 [shape = 'u8[131072]{0}', space=vmem, size = 0x20000, scoped, tag = 'input window, operand 1, single buffered']
    #allocation11 [shape = 's32[1]{0}', space=sflag, size = 0x4, scoped, tag = 'scoped memory for tpu_custom_call.1']
    #allocation12 [shape = 'u8[512]{0}', space=vmem, size = 0x400, scoped, tag = 'output window, operand 0, single buffered']
    #allocation13 [shape = 'u8[1536]{0}', space=vmem, size = 0x800, scoped, tag = 'output window, operand 1, single buffered']
    #allocation14 [shape = 's32[1]{0}', space=sflag, size = 0x4, scoped, tag = 'scoped memory for tpu_custom_call.1']
    %17 = vsyncpa [#allocation8], 0
    %18 = vsyncpa [#allocation11], 0
    %19 = vsyncpa [#allocation9], 0
    %20 = vsyncpa [#allocation14], 0
    // Predicated region
    $region2: #{tpu_custom_call.1} parent=1 // pred_check
      _
    $region3: #{tpu_custom_call.1} parent=1 // pred_check_branch
      %22 = sbr.rel (0) target = $region5
    $region4: #{tpu_custom_call.1} parent=1 // pred_region
      %24 = vsyncadd [#allocation8], 1280
      %s25 = sshll.u32 %s0, 4
      %s26 = int_to_ptr.hbm [resolvable:$true] %s25
      %s27 = sshll.u32 [#allocation7], 4
      %s28 = int_to_ptr.vmem [resolvable:$true] %s27
      %33 = dma.hbm_to_vmem [thread:$0]  %s26, 4864, %s28, [#allocation8], 128, 128, 8
    $region5: #{tpu_custom_call.1} parent=1 // pred_fallthru
      _
    // Predicated region
    $region6: #{tpu_custom_call.1} parent=1 // pred_check
      _
    $region7: #{tpu_custom_call.1} parent=1 // pred_check_branch
      %35 = sbr.rel (0) target = $region9
    $region8: #{tpu_custom_call.1} parent=1 // pred_region
      %37 = vsyncadd [#allocation11], 0
      %s38 = sshll.u32 %s1, 4
      %s39 = int_to_ptr.hbm [resolvable:$true] %s38
      %s40 = sshll.u32 [#allocation10], 4
      %s41 = int_to_ptr.vmem [resolvable:$true] %s40
      %46 = dma.hbm_to_vmem [thread:$0]  %s39, 4096, %s41, [#allocation11], 256, 256, 16
    $region9: #{tpu_custom_call.1} parent=1 // pred_fallthru
      _
    // Predicated region
    $region10: #{tpu_custom_call.1} parent=1 // pred_check
      _
    $region11: #{tpu_custom_call.1} parent=1 // pred_check_branch
      %48 = sbr.rel (0) target = $region13
    $region12: #{tpu_custom_call.1} parent=1 // pred_region
      _
    $region13: #{tpu_custom_call.1} parent=1 // pred_fallthru
      _
    // Predicated region
    $region14: #{tpu_custom_call.1} parent=1 // pred_check
      _
    $region15: #{tpu_custom_call.1} parent=1 // pred_check_branch
      %50 = sbr.rel (0) target = $region17
    $region16: #{tpu_custom_call.1} parent=1 // pred_region
      _
    $region17: #{tpu_custom_call.1} parent=1 // pred_fallthru
      _
    // Predicated region
    $region18: #{tpu_custom_call.1} parent=1 // pred_check
      _
    $region19: #{tpu_custom_call.1} parent=1 // pred_check_branch
      %52 = sbr.rel (0) target = $region21
    $region20: #{tpu_custom_call.1} parent=1 // pred_region
      _
    $region21: #{tpu_custom_call.1} parent=1 // pred_fallthru
      _
    // Predicated region
    $region22: #{tpu_custom_call.1} parent=1 // pred_check
      _
    $region23: #{tpu_custom_call.1} parent=1 // pred_check_branch
      %54 = sbr.rel (0) target = $region25
    $region24: #{tpu_custom_call.1} parent=1 // pred_region
      _
    $region25: #{tpu_custom_call.1} parent=1 // pred_fallthru
      _
    // Predicated region
    $region26: #{tpu_custom_call.1} parent=1 // pred_check
      _
    $region27: #{tpu_custom_call.1} parent=1 // pred_check_branch
      %56 = sbr.rel (0) target = $region29
    $region28: #{tpu_custom_call.1} parent=1 // pred_region
      _
    $region29: #{tpu_custom_call.1} parent=1 // pred_fallthru
      _
    // Predicated region
    $region30: #{tpu_custom_call.1} parent=1 // pred_check
      _
    $region31: #{tpu_custom_call.1} parent=1 // pred_check_branch
      %58 = sbr.rel (0) target = $region33
    $region32: #{tpu_custom_call.1} parent=1 // pred_region
      %60 = dma.done [#allocation8], 6144
    $region33: #{tpu_custom_call.1} parent=1 // pred_fallthru
      _
    // Predicated region
    $region34: #{tpu_custom_call.1} parent=1 // pred_check
      _
    $region35: #{tpu_custom_call.1} parent=1 // pred_check_branch
      %62 = sbr.rel (0) target = $region37
    $region36: #{tpu_custom_call.1} parent=1 // pred_region
      %64 = dma.done [#allocation11], 4096
    $region37: #{tpu_custom_call.1} parent=1 // pred_fallthru
      _
    %p65 = scmp.eq.s32.totalorder 0, 0
    // Predicated region
    $region38: #{tpu_custom_call.1} parent=1 // pred_check
      %p66 = pneg %p65
    $region39: #{tpu_custom_call.1} parent=1 // pred_check_branch
      %68 = sbr.rel (%p66) target = $region41
    $region40: #{tpu_custom_call.1} parent=1 // pred_region
      %vm69 = vcmask 0
      %70 = vst.msk [vmem:[#allocation2] sm:$0x1] %vm69, -inf
      %71 = vst.msk [vmem:[#allocation3] sm:$0x1] %vm69, 0.0
      %72 = vst [vmem:[#allocation4] sm:$0x1] 0.0
    $region41: #{tpu_custom_call.1} parent=1 // pred_fallthru
      _
    %s73 = smul.u32 0, 384
    %v74 = vlaneseq
    %v75 = vshrl.u32 %v74, 7
    %v76 = vadd.s32 %v75, 8
    %v77 = vadd.s32 %v75, 16
    %v78 = vadd.s32 %v75, 24
    %v79 = vadd.s32 %v75, 32
    %v80 = vadd.s32 %v75, 40
    %v81 = vadd.s32 %v75, 48
    %v82 = vadd.s32 %v75, 56
    %v83 = vadd.s32 %v75, 64
    %v84 = vadd.s32 %v75, 72
    %v85 = vadd.s32 %v75, 80
    %v86 = vadd.s32 %v75, 88
    %v87 = vadd.s32 %v75, 96
    %v88 = vadd.s32 %v75, 104
    %v89 = vadd.s32 %v75, 112
    %v90 = vadd.s32 %v75, 120
    %v91 = vadd.s32 %v75, 128
    %v92 = vadd.s32 %v75, 136
    %v93 = vadd.s32 %v75, 144
    %v94 = vadd.s32 %v75, 152
    %v95 = vadd.s32 %v75, 160
    %v96 = vadd.s32 %v75, 168
    %v97 = vadd.s32 %v75, 176
    %v98 = vadd.s32 %v75, 184
    %v99 = vadd.s32 %v75, 192
    %v100 = vadd.s32 %v75, 200
    %v101 = vadd.s32 %v75, 208
    %v102 = vadd.s32 %v75, 216
    %v103 = vadd.s32 %v75, 224
    %v104 = vadd.s32 %v75, 232
    %v105 = vadd.s32 %v75, 240
    %v106 = vadd.s32 %v75, 248
    %v107 = vadd.s32 %v75, 256
    %v108 = vadd.s32 %v75, 264
    %v109 = vadd.s32 %v75, 272
    %v110 = vadd.s32 %v75, 280
    %v111 = vadd.s32 %v75, 288
    %v112 = vadd.s32 %v75, 296
    %v113 = vadd.s32 %v75, 304
    %v114 = vadd.s32 %v75, 312
    %v115 = vadd.s32 %v75, 320
    %v116 = vadd.s32 %v75, 328
    %v117 = vadd.s32 %v75, 336
    %v118 = vadd.s32 %v75, 344
    %v119 = vadd.s32 %v75, 352
    %v120 = vadd.s32 %v75, 360
    %v121 = vadd.s32 %v75, 368
    %v122 = vadd.s32 %v75, 376
    %v123 = vstv %s73
    %v124 = vadd.s32 %v123, %v75
    %v125 = vadd.s32 %v123, %v76
    %v126 = vadd.s32 %v123, %v77
    %v127 = vadd.s32 %v123, %v78
    %v128 = vadd.s32 %v123, %v79
    %v129 = vadd.s32 %v123, %v80
    %v130 = vadd.s32 %v123, %v81
    %v131 = vadd.s32 %v123, %v82
    %v132 = vadd.s32 %v123, %v83
    %v133 = vadd.s32 %v123, %v84
    %v134 = vadd.s32 %v123, %v85
    %v135 = vadd.s32 %v123, %v86
    %v136 = vadd.s32 %v123, %v87
    %v137 = vadd.s32 %v123, %v88
    %v138 = vadd.s32 %v123, %v89
    %v139 = vadd.s32 %v123, %v90
    %v140 = vadd.s32 %v123, %v91
    %v141 = vadd.s32 %v123, %v92
    %v142 = vadd.s32 %v123, %v93
    %v143 = vadd.s32 %v123, %v94
    %v144 = vadd.s32 %v123, %v95
    %v145 = vadd.s32 %v123, %v96
    %v146 = vadd.s32 %v123, %v97
    %v147 = vadd.s32 %v123, %v98
    %v148 = vadd.s32 %v123, %v99
    %v149 = vadd.s32 %v123, %v100
    %v150 = vadd.s32 %v123, %v101
    %v151 = vadd.s32 %v123, %v102
    %v152 = vadd.s32 %v123, %v103
    %v153 = vadd.s32 %v123, %v104
    %v154 = vadd.s32 %v123, %v105
    %v155 = vadd.s32 %v123, %v106
    %v156 = vadd.s32 %v123, %v107
    %v157 = vadd.s32 %v123, %v108
    %v158 = vadd.s32 %v123, %v109
    %v159 = vadd.s32 %v123, %v110
    %v160 = vadd.s32 %v123, %v111
    %v161 = vadd.s32 %v123, %v112
    %v162 = vadd.s32 %v123, %v113
    %v163 = vadd.s32 %v123, %v114
    %v164 = vadd.s32 %v123, %v115
    %v165 = vadd.s32 %v123, %v116
    %v166 = vadd.s32 %v123, %v117
    %v167 = vadd.s32 %v123, %v118
    %v168 = vadd.s32 %v123, %v119
    %v169 = vadd.s32 %v123, %v120
    %v170 = vadd.s32 %v123, %v121
    %v171 = vadd.s32 %v123, %v122
    %vm172 = vcmp.lt.s32.totalorder %v124, 300
    %vm173 = vcmp.lt.s32.totalorder %v125, 300
    %vm174 = vcmp.lt.s32.totalorder %v126, 300
    %vm175 = vcmp.lt.s32.totalorder %v127, 300
    %vm176 = vcmp.lt.s32.totalorder %v128, 300
    %vm177 = vcmp.lt.s32.totalorder %v129, 300
    %vm178 = vcmp.lt.s32.totalorder %v130, 300
    %vm179 = vcmp.lt.s32.totalorder %v131, 300
    %vm180 = vcmp.lt.s32.totalorder %v132, 300
    %vm181 = vcmp.lt.s32.totalorder %v133, 300
    %vm182 = vcmp.lt.s32.totalorder %v134, 300
    %vm183 = vcmp.lt.s32.totalorder %v135, 300
    %vm184 = vcmp.lt.s32.totalorder %v136, 300
    %vm185 = vcmp.lt.s32.totalorder %v137, 300
    %vm186 = vcmp.lt.s32.totalorder %v138, 300
    %vm187 = vcmp.lt.s32.totalorder %v139, 300
    %vm188 = vcmp.lt.s32.totalorder %v140, 300
    %vm189 = vcmp.lt.s32.totalorder %v141, 300
    %vm190 = vcmp.lt.s32.totalorder %v142, 300
    %vm191 = vcmp.lt.s32.totalorder %v143, 300
    %vm192 = vcmp.lt.s32.totalorder %v144, 300
    %vm193 = vcmp.lt.s32.totalorder %v145, 300
    %vm194 = vcmp.lt.s32.totalorder %v146, 300
    %vm195 = vcmp.lt.s32.totalorder %v147, 300
    %vm196 = vcmp.lt.s32.totalorder %v148, 300
    %vm197 = vcmp.lt.s32.totalorder %v149, 300
    %vm198 = vcmp.lt.s32.totalorder %v150, 300
    %vm199 = vcmp.lt.s32.totalorder %v151, 300
    %vm200 = vcmp.lt.s32.totalorder %v152, 300
    %vm201 = vcmp.lt.s32.totalorder %v153, 300
    %vm202 = vcmp.lt.s32.totalorder %v154, 300
    %vm203 = vcmp.lt.s32.totalorder %v155, 300
    %vm204 = vcmp.lt.s32.totalorder %v156, 300
    %vm205 = vcmp.lt.s32.totalorder %v157, 300
    %vm206 = vcmp.lt.s32.totalorder %v158, 300
    %vm207 = vcmp.lt.s32.totalorder %v159, 300
    %vm208 = vcmp.lt.s32.totalorder %v160, 300
    %vm209 = vcmp.lt.s32.totalorder %v161, 300
    %vm210 = vcmp.lt.s32.totalorder %v162, 300
    %vm211 = vcmp.lt.s32.totalorder %v163, 300
    %vm212 = vcmp.lt.s32.totalorder %v164, 300
    %vm213 = vcmp.lt.s32.totalorder %v165, 300
    %vm214 = vcmp.lt.s32.totalorder %v166, 300
    %vm215 = vcmp.lt.s32.totalorder %v167, 300
    %vm216 = vcmp.lt.s32.totalorder %v168, 300
    %vm217 = vcmp.lt.s32.totalorder %v169, 300
    %vm218 = vcmp.lt.s32.totalorder %v170, 300
    %vm219 = vcmp.lt.s32.totalorder %v171, 300
    %v220 = vld [vmem:[#allocation7] sm:$0xff]
    %v221 = vld [vmem:[#allocation7 + $0x8] sm:$0xff]
    %v222 = vld [vmem:[#allocation7 + $0x10] sm:$0xff]
    %v223 = vld [vmem:[#allocation7 + $0x18] sm:$0xff]
    %v224 = vld [vmem:[#allocation7 + $0x20] sm:$0xff]
    %v225 = vld [vmem:[#allocation7 + $0x28] sm:$0xff]
    %v226 = vld [vmem:[#allocation7 + $0x30] sm:$0xff]
    %v227 = vld [vmem:[#allocation7 + $0x38] sm:$0xff]
    %v228 = vld [vmem:[#allocation7 + $0x40] sm:$0xff]
    %v229 = vld [vmem:[#allocation7 + $0x48] sm:$0xff]
    %v230 = vld [vmem:[#allocation7 + $0x50] sm:$0xff]
    %v231 = vld [vmem:[#allocation7 + $0x58] sm:$0xff]
    %v232 = vld [vmem:[#allocation7 + $0x60] sm:$0xff]
    %v233 = vld [vmem:[#allocation7 + $0x68] sm:$0xff]
    %v234 = vld [vmem:[#allocation7 + $0x70] sm:$0xff]
    %v235 = vld [vmem:[#allocation7 + $0x78] sm:$0xff]
    %v236 = vld [vmem:[#allocation7 + $0x80] sm:$0xff]
    %v237 = vld [vmem:[#allocation7 + $0x88] sm:$0xff]
    %v238 = vld [vmem:[#allocation7 + $0x90] sm:$0xff]
    %v239 = vld [vmem:[#allocation7 + $0x98] sm:$0xff]
    %v240 = vld [vmem:[#allocation7 + $0xa0] sm:$0xff]
    %v241 = vld [vmem:[#allocation7 + $0xa8] sm:$0xff]
    %v242 = vld [vmem:[#allocation7 + $0xb0] sm:$0xff]
    %v243 = vld [vmem:[#allocation7 + $0xb8] sm:$0xff]
    %v244 = vld [vmem:[#allocation7 + $0xc0] sm:$0xff]
    %v245 = vld [vmem:[#allocation7 + $0xc8] sm:$0xff]
    %v246 = vld [vmem:[#allocation7 + $0xd0] sm:$0xff]
    %v247 = vld [vmem:[#allocation7 + $0xd8] sm:$0xff]
    %v248 = vld [vmem:[#allocation7 + $0xe0] sm:$0xff]
    %v249 = vld [vmem:[#allocation7 + $0xe8] sm:$0xff]
    %v250 = vld [vmem:[#allocation7 + $0xf0] sm:$0xff]
    %v251 = vld [vmem:[#allocation7 + $0xf8] sm:$0xff]
    %v252 = vld [vmem:[#allocation7 + $0x100] sm:$0xff]
    %v253 = vld [vmem:[#allocation7 + $0x108] sm:$0xff]
    %v254 = vld [vmem:[#allocation7 + $0x110] sm:$0xff]
    %v255 = vld [vmem:[#allocation7 + $0x118] sm:$0xff]
    %v256 = vld [vmem:[#allocation7 + $0x120] sm:$0xff]
    %v257 = vld [vmem:[#allocation7 + $0x128] sm:$0xff]
    %v258 = vld [vmem:[#allocation7 + $0x130] sm:$0xff]
    %v259 = vld [vmem:[#allocation7 + $0x138] sm:$0xff]
    %v260 = vld [vmem:[#allocation7 + $0x140] sm:$0xff]
    %v261 = vld [vmem:[#allocation7 + $0x148] sm:$0xff]
    %v262 = vld [vmem:[#allocation7 + $0x150] sm:$0xff]
    %v263 = vld [vmem:[#allocation7 + $0x158] sm:$0xff]
    %v264 = vld [vmem:[#allocation7 + $0x160] sm:$0xff]
    %v265 = vld [vmem:[#allocation7 + $0x168] sm:$0xff]
    %v266 = vld [vmem:[#allocation7 + $0x170] sm:$0xff]
    %v267 = vld [vmem:[#allocation7 + $0x178] sm:$0xff]
    %v268 = vsel %vm172, 1, 0
    %v269 = vsel %vm173, 1, 0
    %v270 = vsel %vm174, 1, 0
    %v271 = vsel %vm175, 1, 0
    %v272 = vsel %vm176, 1, 0
    %v273 = vsel %vm177, 1, 0
    %v274 = vsel %vm178, 1, 0
    %v275 = vsel %vm179, 1, 0
    %v276 = vsel %vm180, 1, 0
    %v277 = vsel %vm181, 1, 0
    %v278 = vsel %vm182, 1, 0
    %v279 = vsel %vm183, 1, 0
    %v280 = vsel %vm184, 1, 0
    %v281 = vsel %vm185, 1, 0
    %v282 = vsel %vm186, 1, 0
    %v283 = vsel %vm187, 1, 0
    %v284 = vsel %vm188, 1, 0
    %v285 = vsel %vm189, 1, 0
    %v286 = vsel %vm190, 1, 0
    %v287 = vsel %vm191, 1, 0
    %v288 = vsel %vm192, 1, 0
    %v289 = vsel %vm193, 1, 0
    %v290 = vsel %vm194, 1, 0
    %v291 = vsel %vm195, 1, 0
    %v292 = vsel %vm196, 1, 0
    %v293 = vsel %vm197, 1, 0
    %v294 = vsel %vm198, 1, 0
    %v295 = vsel %vm199, 1, 0
    %v296 = vsel %vm200, 1, 0
    %v297 = vsel %vm201, 1, 0
    %v298 = vsel %vm202, 1, 0
    %v299 = vsel %vm203, 1, 0
    %v300 = vsel %vm204, 1, 0
    %v301 = vsel %vm205, 1, 0
    %v302 = vsel %vm206, 1, 0
    %v303 = vsel %vm207, 1, 0
    %v304 = vsel %vm208, 1, 0
    %v305 = vsel %vm209, 1, 0
    %v306 = vsel %vm210, 1, 0
    %v307 = vsel %vm211, 1, 0
    %v308 = vsel %vm212, 1, 0
    %v309 = vsel %vm213, 1, 0
    %v310 = vsel %vm214, 1, 0
    %v311 = vsel %vm215, 1, 0
    %v312 = vsel %vm216, 1, 0
    %v313 = vsel %vm217, 1, 0
    %v314 = vsel %vm218, 1, 0
    %v315 = vsel %vm219, 1, 0
    %vm316 = vcmp.eq.s32.totalorder %v268, 1
    %vm317 = vcmp.eq.s32.totalorder %v269, 1
    %vm318 = vcmp.eq.s32.totalorder %v270, 1
    %vm319 = vcmp.eq.s32.totalorder %v271, 1
    %vm320 = vcmp.eq.s32.totalorder %v272, 1
    %vm321 = vcmp.eq.s32.totalorder %v273, 1
    %vm322 = vcmp.eq.s32.totalorder %v274, 1
    %vm323 = vcmp.eq.s32.totalorder %v275, 1
    %vm324 = vcmp.eq.s32.totalorder %v276, 1
    %vm325 = vcmp.eq.s32.totalorder %v277, 1
    %vm326 = vcmp.eq.s32.totalorder %v278, 1
    %vm327 = vcmp.eq.s32.totalorder %v279, 1
    %vm328 = vcmp.eq.s32.totalorder %v280, 1
    %vm329 = vcmp.eq.s32.totalorder %v281, 1
    %vm330 = vcmp.eq.s32.totalorder %v282, 1
    %vm331 = vcmp.eq.s32.totalorder %v283, 1
    %vm332 = vcmp.eq.s32.totalorder %v284, 1
    %vm333 = vcmp.eq.s32.totalorder %v285, 1
    %vm334 = vcmp.eq.s32.totalorder %v286, 1
    %vm335 = vcmp.eq.s32.totalorder %v287, 1
    %vm336 = vcmp.eq.s32.totalorder %v288, 1
    %vm337 = vcmp.eq.s32.totalorder %v289, 1
    %vm338 = vcmp.eq.s32.totalorder %v290, 1
    %vm339 = vcmp.eq.s32.totalorder %v291, 1
    %vm340 = vcmp.eq.s32.totalorder %v292, 1
    %vm341 = vcmp.eq.s32.totalorder %v293, 1
    %vm342 = vcmp.eq.s32.totalorder %v294, 1
    %vm343 = vcmp.eq.s32.totalorder %v295, 1
    %vm344 = vcmp.eq.s32.totalorder %v296, 1
    %vm345 = vcmp.eq.s32.totalorder %v297, 1
    %vm346 = vcmp.eq.s32.totalorder %v298, 1
    %vm347 = vcmp.eq.s32.totalorder %v299, 1
    %vm348 = vcmp.eq.s32.totalorder %v300, 1
    %vm349 = vcmp.eq.s32.totalorder %v301, 1
    %vm350 = vcmp.eq.s32.totalorder %v302, 1
    %vm351 = vcmp.eq.s32.totalorder %v303, 1
    %vm352 = vcmp.eq.s32.totalorder %v304, 1
    %vm353 = vcmp.eq.s32.totalorder %v305, 1
    %vm354 = vcmp.eq.s32.totalorder %v306, 1
    %vm355 = vcmp.eq.s32.totalorder %v307, 1
    %vm356 = vcmp.eq.s32.totalorder %v308, 1
    %vm357 = vcmp.eq.s32.totalorder %v309, 1
    %vm358 = vcmp.eq.s32.totalorder %v310, 1
    %vm359 = vcmp.eq.s32.totalorder %v311, 1
    %vm360 = vcmp.eq.s32.totalorder %v312, 1
    %vm361 = vcmp.eq.s32.totalorder %v313, 1
    %vm362 = vcmp.eq.s32.totalorder %v314, 1
    %vm363 = vcmp.eq.s32.totalorder %v315, 1
    %v364 = vsel %vm316, %v220, 0.0
    %v365 = vsel %vm317, %v221, 0.0
    %v366 = vsel %vm318, %v222, 0.0
    %v367 = vsel %vm319, %v223, 0.0
    %v368 = vsel %vm320, %v224, 0.0
    %v369 = vsel %vm321, %v225, 0.0
    %v370 = vsel %vm322, %v226, 0.0
    %v371 = vsel %vm323, %v227, 0.0
    %v372 = vsel %vm324, %v228, 0.0
    %v373 = vsel %vm325, %v229, 0.0
    %v374 = vsel %vm326, %v230, 0.0
    %v375 = vsel %vm327, %v231, 0.0
    %v376 = vsel %vm328, %v232, 0.0
    %v377 = vsel %vm329, %v233, 0.0
    %v378 = vsel %vm330, %v234, 0.0
    %v379 = vsel %vm331, %v235, 0.0
    %v380 = vsel %vm332, %v236, 0.0
    %v381 = vsel %vm333, %v237, 0.0
    %v382 = vsel %vm334, %v238, 0.0
    %v383 = vsel %vm335, %v239, 0.0
    %v384 = vsel %vm336, %v240, 0.0
    %v385 = vsel %vm337, %v241, 0.0
    %v386 = vsel %vm338, %v242, 0.0
    %v387 = vsel %vm339, %v243, 0.0
    %v388 = vsel %vm340, %v244, 0.0
    %v389 = vsel %vm341, %v245, 0.0
    %v390 = vsel %vm342, %v246, 0.0
    %v391 = vsel %vm343, %v247, 0.0
    %v392 = vsel %vm344, %v248, 0.0
    %v393 = vsel %vm345, %v249, 0.0
    %v394 = vsel %vm346, %v250, 0.0
    %v395 = vsel %vm347, %v251, 0.0
    %v396 = vsel %vm348, %v252, 0.0
    %v397 = vsel %vm349, %v253, 0.0
    %v398 = vsel %vm350, %v254, 0.0
    %v399 = vsel %vm351, %v255, 0.0
    %v400 = vsel %vm352, %v256, 0.0
    %v401 = vsel %vm353, %v257, 0.0
    %v402 = vsel %vm354, %v258, 0.0
    %v403 = vsel %vm355, %v259, 0.0
    %v404 = vsel %vm356, %v260, 0.0
    %v405 = vsel %vm357, %v261, 0.0
    %v406 = vsel %vm358, %v262, 0.0
    %v407 = vsel %vm359, %v263, 0.0
    %v408 = vsel %vm360, %v264, 0.0
    %v409 = vsel %vm361, %v265, 0.0
    %v410 = vsel %vm362, %v266, 0.0
    %v411 = vsel %vm363, %v267, 0.0
    %v412 = vpack.c.bf16 %v365, %v364
    %v413 = vpack.c.bf16 %v367, %v366
    %v414 = vpack.c.bf16 %v369, %v368
    %v415 = vpack.c.bf16 %v371, %v370
    %v416 = vpack.c.bf16 %v373, %v372
    %v417 = vpack.c.bf16 %v375, %v374
    %v418 = vpack.c.bf16 %v377, %v376
    %v419 = vpack.c.bf16 %v379, %v378
    %v420 = vpack.c.bf16 %v381, %v380
    %v421 = vpack.c.bf16 %v383, %v382
    %v422 = vpack.c.bf16 %v385, %v384
    %v423 = vpack.c.bf16 %v387, %v386
    %v424 = vpack.c.bf16 %v389, %v388
    %v425 = vpack.c.bf16 %v391, %v390
    %v426 = vpack.c.bf16 %v393, %v392
    %v427 = vpack.c.bf16 %v395, %v394
    %v428 = vpack.c.bf16 %v397, %v396
    %v429 = vpack.c.bf16 %v399, %v398
    %v430 = vpack.c.bf16 %v401, %v400
    %v431 = vpack.c.bf16 %v403, %v402
    %v432 = vpack.c.bf16 %v405, %v404
    %v433 = vpack.c.bf16 %v407, %v406
    %v434 = vpack.c.bf16 %v409, %v408
    %v435 = vpack.c.bf16 %v411, %v410
    %v436 = vld [vmem:[#allocation10] sm:$0xff]
    %v437 = vld [vmem:[#allocation10 + $0x8] sm:$0xff]
    %v438 = vld [vmem:[#allocation10 + $0x10] sm:$0xff]
    %v439 = vld [vmem:[#allocation10 + $0x18] sm:$0xff]
    %v440 = vld [vmem:[#allocation10 + $0x20] sm:$0xff]
    %v441 = vld [vmem:[#allocation10 + $0x28] sm:$0xff]
    %v442 = vld [vmem:[#allocation10 + $0x30] sm:$0xff]
    %v443 = vld [vmem:[#allocation10 + $0x38] sm:$0xff]
    %v444 = vld [vmem:[#allocation10 + $0x40] sm:$0xff]
    %v445 = vld [vmem:[#allocation10 + $0x48] sm:$0xff]
    %v446 = vld [vmem:[#allocation10 + $0x50] sm:$0xff]
    %v447 = vld [vmem:[#allocation10 + $0x58] sm:$0xff]
    %v448 = vld [vmem:[#allocation10 + $0x60] sm:$0xff]
    %v449 = vld [vmem:[#allocation10 + $0x68] sm:$0xff]
    %v450 = vld [vmem:[#allocation10 + $0x70] sm:$0xff]
    %v451 = vld [vmem:[#allocation10 + $0x78] sm:$0xff]
    %v452 = vld [vmem:[#allocation10 + $0x80] sm:$0xff]
    %v453 = vld [vmem:[#allocation10 + $0x88] sm:$0xff]
    %v454 = vld [vmem:[#allocation10 + $0x90] sm:$0xff]
    %v455 = vld [vmem:[#allocation10 + $0x98] sm:$0xff]
    %v456 = vld [vmem:[#allocation10 + $0xa0] sm:$0xff]
    %v457 = vld [vmem:[#allocation10 + $0xa8] sm:$0xff]
    %v458 = vld [vmem:[#allocation10 + $0xb0] sm:$0xff]
    %v459 = vld [vmem:[#allocation10 + $0xb8] sm:$0xff]
    %v460 = vld [vmem:[#allocation10 + $0xc0] sm:$0xff]
    %v461 = vld [vmem:[#allocation10 + $0xc8] sm:$0xff]
    %v462 = vld [vmem:[#allocation10 + $0xd0] sm:$0xff]
    %v463 = vld [vmem:[#allocation10 + $0xd8] sm:$0xff]
    %v464 = vld [vmem:[#allocation10 + $0xe0] sm:$0xff]
    %v465 = vld [vmem:[#allocation10 + $0xe8] sm:$0xff]
    %v466 = vld [vmem:[#allocation10 + $0xf0] sm:$0xff]
    %v467 = vld [vmem:[#allocation10 + $0xf8] sm:$0xff]
    %v468 = vld [vmem:[%s2] sm:$0xf]
    %v470 = vperm.slane %v468, 0
    %v471 = vperm.slane %v468, 1
    %v472 = vperm.slane %v468, 2
    %v473 = vperm.slane %v468, 3
    %v510 = vunpack.c.l.b16 %v436
    %v511 = vunpack.c.h.b16 %v436
    %v512 = vunpack.c.l.b16 %v437
    %v513 = vunpack.c.h.b16 %v437
    %v514 = vunpack.c.l.b16 %v438
    %v515 = vunpack.c.h.b16 %v438
    %v516 = vunpack.c.l.b16 %v439
    %v517 = vunpack.c.h.b16 %v439
    %v518 = vunpack.c.l.b16 %v440
    %v519 = vunpack.c.h.b16 %v440
    %v520 = vunpack.c.l.b16 %v441
    %v521 = vunpack.c.h.b16 %v441
    %v522 = vunpack.c.l.b16 %v442
    %v523 = vunpack.c.h.b16 %v442
    %v524 = vunpack.c.l.b16 %v443
    %v525 = vunpack.c.h.b16 %v443
    %v526 = vunpack.c.l.b16 %v444
    %v527 = vunpack.c.h.b16 %v444
    %v528 = vunpack.c.l.b16 %v445
    %v529 = vunpack.c.h.b16 %v445
    %v530 = vunpack.c.l.b16 %v446
    %v531 = vunpack.c.h.b16 %v446
    %v532 = vunpack.c.l.b16 %v447
    %v533 = vunpack.c.h.b16 %v447
    %v534 = vunpack.c.l.b16 %v448
    %v535 = vunpack.c.h.b16 %v448
    %v536 = vunpack.c.l.b16 %v449
    %v537 = vunpack.c.h.b16 %v449
    %v538 = vunpack.c.l.b16 %v450
    %v539 = vunpack.c.h.b16 %v450
    %v540 = vunpack.c.l.b16 %v451
    %v541 = vunpack.c.h.b16 %v451
    %v542 = vunpack.c.l.b16 %v452
    %v543 = vunpack.c.h.b16 %v452
    %v544 = vunpack.c.l.b16 %v453
    %v545 = vunpack.c.h.b16 %v453
    %v546 = vunpack.c.l.b16 %v454
    %v547 = vunpack.c.h.b16 %v454
    %v548 = vunpack.c.l.b16 %v455
    %v549 = vunpack.c.h.b16 %v455
    %v550 = vunpack.c.l.b16 %v456
    %v551 = vunpack.c.h.b16 %v456
    %v552 = vunpack.c.l.b16 %v457
    %v553 = vunpack.c.h.b16 %v457
    %v554 = vunpack.c.l.b16 %v458
    %v555 = vunpack.c.h.b16 %v458
    %v556 = vunpack.c.l.b16 %v459
    %v557 = vunpack.c.h.b16 %v459
    %v558 = vunpack.c.l.b16 %v460
    %v559 = vunpack.c.h.b16 %v460
    %v560 = vunpack.c.l.b16 %v461
    %v561 = vunpack.c.h.b16 %v461
    %v562 = vunpack.c.l.b16 %v462
    %v563 = vunpack.c.h.b16 %v462
    %v564 = vunpack.c.l.b16 %v463
    %v565 = vunpack.c.h.b16 %v463
    %v566 = vunpack.c.l.b16 %v464
    %v567 = vunpack.c.h.b16 %v464
    %v568 = vunpack.c.l.b16 %v465
    %v569 = vunpack.c.h.b16 %v465
    %v570 = vunpack.c.l.b16 %v466
    %v571 = vunpack.c.h.b16 %v466
    %v572 = vunpack.c.l.b16 %v467
    %v573 = vunpack.c.h.b16 %v467
    %v574 = vpack.c.b16 %v514, %v510
    %v575 = vpack.c.b16 %v515, %v511
    %v576 = vpack.c.b16 %v516, %v512
    %v577 = vpack.c.b16 %v517, %v513
    %v578 = vpack.c.b16 %v522, %v518
    %v579 = vpack.c.b16 %v523, %v519
    %v580 = vpack.c.b16 %v524, %v520
    %v581 = vpack.c.b16 %v525, %v521
    %v582 = vpack.c.b16 %v530, %v526
    %v583 = vpack.c.b16 %v531, %v527
    %v584 = vpack.c.b16 %v532, %v528
    %v585 = vpack.c.b16 %v533, %v529
    %v586 = vpack.c.b16 %v538, %v534
    %v587 = vpack.c.b16 %v539, %v535
    %v588 = vpack.c.b16 %v540, %v536
    %v589 = vpack.c.b16 %v541, %v537
    %v590 = vpack.c.b16 %v546, %v542
    %v591 = vpack.c.b16 %v547, %v543
    %v592 = vpack.c.b16 %v548, %v544
    %v593 = vpack.c.b16 %v549, %v545
    %v594 = vpack.c.b16 %v554, %v550
    %v595 = vpack.c.b16 %v555, %v551
    %v596 = vpack.c.b16 %v556, %v552
    %v597 = vpack.c.b16 %v557, %v553
    %v598 = vpack.c.b16 %v562, %v558
    %v599 = vpack.c.b16 %v563, %v559
    %v600 = vpack.c.b16 %v564, %v560
    %v601 = vpack.c.b16 %v565, %v561
    %v602 = vpack.c.b16 %v570, %v566
    %v603 = vpack.c.b16 %v571, %v567
    %v604 = vpack.c.b16 %v572, %v568
    %v605 = vpack.c.b16 %v573, %v569
    %638 = vmatpush.bf16.msra.mxu0 %v602
    %639 = vmatpush.bf16.msra.mxu0 %v598
    %640 = vmatpush.bf16.msra.mxu0 %v594
    %641 = vmatpush.bf16.msra.mxu0 %v590
    %642 = vmatpush.bf16.msra.mxu0 %v586
    %643 = vmatpush.bf16.msra.mxu0 %v582
    %644 = vmatpush.bf16.msra.mxu0 %v578
    %645 = vmatpush.bf16.msra.mxu0 %v574
    %646 = vmatmul.bf16.gmra.mxu0 %v412
    %v647 = vpop.f32.mrf.mxu0
    %v648 = vadd.f32 %v470, %v647
    %v649 = vpop.f32.mrf.mxu0
    %v650 = vadd.f32 %v470, %v649
    %651 = vmatmul.bf16.gmra.mxu0 %v413
    %v652 = vpop.f32.mrf.mxu0
    %v653 = vadd.f32 %v470, %v652
    %v654 = vpop.f32.mrf.mxu0
    %v655 = vadd.f32 %v470, %v654
    %656 = vmatmul.bf16.gmra.mxu0 %v414
    %v657 = vpop.f32.mrf.mxu0
    %v658 = vadd.f32 %v470, %v657
    %v659 = vpop.f32.mrf.mxu0
    %v660 = vadd.f32 %v470, %v659
    %661 = vmatmul.bf16.gmra.mxu0 %v415
    %v662 = vpop.f32.mrf.mxu0
    %v663 = vadd.f32 %v470, %v662
    %v664 = vpop.f32.mrf.mxu0
    %v665 = vadd.f32 %v470, %v664
    %666 = vmatmul.bf16.gmra.mxu0 %v416
    %v667 = vpop.f32.mrf.mxu0
    %v668 = vadd.f32 %v470, %v667
    %v669 = vpop.f32.mrf.mxu0
    %v670 = vadd.f32 %v470, %v669
    %671 = vmatmul.bf16.gmra.mxu0 %v417
    %v672 = vpop.f32.mrf.mxu0
    %v673 = vadd.f32 %v470, %v672
    %v674 = vpop.f32.mrf.mxu0
    %v675 = vadd.f32 %v470, %v674
    %676 = vmatmul.bf16.gmra.mxu0 %v418
    %v677 = vpop.f32.mrf.mxu0
    %v678 = vadd.f32 %v470, %v677
    %v679 = vpop.f32.mrf.mxu0
    %v680 = vadd.f32 %v470, %v679
    %681 = vmatmul.bf16.gmra.mxu0 %v419
    %v682 = vpop.f32.mrf.mxu0
    %v683 = vadd.f32 %v470, %v682
    %v684 = vpop.f32.mrf.mxu0
    %v685 = vadd.f32 %v470, %v684
    %686 = vmatmul.bf16.gmra.mxu0 %v420
    %v687 = vpop.f32.mrf.mxu0
    %v688 = vadd.f32 %v470, %v687
    %v689 = vpop.f32.mrf.mxu0
    %v690 = vadd.f32 %v470, %v689
    %691 = vmatmul.bf16.gmra.mxu0 %v421
    %v692 = vpop.f32.mrf.mxu0
    %v693 = vadd.f32 %v470, %v692
    %v694 = vpop.f32.mrf.mxu0
    %v695 = vadd.f32 %v470, %v694
    %696 = vmatmul.bf16.gmra.mxu0 %v422
    %v697 = vpop.f32.mrf.mxu0
    %v698 = vadd.f32 %v470, %v697
    %v699 = vpop.f32.mrf.mxu0
    %v700 = vadd.f32 %v470, %v699
    %701 = vmatmul.bf16.gmra.mxu0 %v423
    %v702 = vpop.f32.mrf.mxu0
    %v703 = vadd.f32 %v470, %v702
    %v704 = vpop.f32.mrf.mxu0
    %v705 = vadd.f32 %v470, %v704
    %706 = vmatmul.bf16.gmra.mxu0 %v424
    %v707 = vpop.f32.mrf.mxu0
    %v708 = vadd.f32 %v470, %v707
    %v709 = vpop.f32.mrf.mxu0
    %v710 = vadd.f32 %v470, %v709
    %711 = vmatmul.bf16.gmra.mxu0 %v425
    %v712 = vpop.f32.mrf.mxu0
    %v713 = vadd.f32 %v470, %v712
    %v714 = vpop.f32.mrf.mxu0
    %v715 = vadd.f32 %v470, %v714
    %716 = vmatmul.bf16.gmra.mxu0 %v426
    %v717 = vpop.f32.mrf.mxu0
    %v718 = vadd.f32 %v470, %v717
    %v719 = vpop.f32.mrf.mxu0
    %v720 = vadd.f32 %v470, %v719
    %721 = vmatmul.bf16.gmra.mxu0 %v427
    %v722 = vpop.f32.mrf.mxu0
    %v723 = vadd.f32 %v470, %v722
    %v724 = vpop.f32.mrf.mxu0
    %v725 = vadd.f32 %v470, %v724
    %726 = vmatmul.bf16.gmra.mxu0 %v428
    %v727 = vpop.f32.mrf.mxu0
    %v728 = vadd.f32 %v470, %v727
    %v729 = vpop.f32.mrf.mxu0
    %v730 = vadd.f32 %v470, %v729
    %731 = vmatmul.bf16.gmra.mxu0 %v429
    %v732 = vpop.f32.mrf.mxu0
    %v733 = vadd.f32 %v470, %v732
    %v734 = vpop.f32.mrf.mxu0
    %v735 = vadd.f32 %v470, %v734
    %736 = vmatmul.bf16.gmra.mxu0 %v430
    %v737 = vpop.f32.mrf.mxu0
    %v738 = vadd.f32 %v470, %v737
    %v739 = vpop.f32.mrf.mxu0
    %v740 = vadd.f32 %v470, %v739
    %741 = vmatmul.bf16.gmra.mxu0 %v431
    %v742 = vpop.f32.mrf.mxu0
    %v743 = vadd.f32 %v470, %v742
    %v744 = vpop.f32.mrf.mxu0
    %v745 = vadd.f32 %v470, %v744
    %746 = vmatmul.bf16.gmra.mxu0 %v432
    %v747 = vpop.f32.mrf.mxu0
    %v748 = vadd.f32 %v470, %v747
    %v749 = vpop.f32.mrf.mxu0
    %v750 = vadd.f32 %v470, %v749
    %751 = vmatmul.bf16.gmra.mxu0 %v433
    %v752 = vpop.f32.mrf.mxu0
    %v753 = vadd.f32 %v470, %v752
    %v754 = vpop.f32.mrf.mxu0
    %v755 = vadd.f32 %v470, %v754
    %756 = vmatmul.bf16.gmra.mxu0 %v434
    %v757 = vpop.f32.mrf.mxu0
    %v758 = vadd.f32 %v470, %v757
    %v759 = vpop.f32.mrf.mxu0
    %v760 = vadd.f32 %v470, %v759
    %761 = vmatmul.bf16.gmra.mxu0 %v435
    %v762 = vpop.f32.mrf.mxu0
    %v763 = vadd.f32 %v470, %v762
    %v764 = vpop.f32.mrf.mxu0
    %v765 = vadd.f32 %v470, %v764
    %766 = vdwg.mxu0
    %767 = vmatpush.bf16.msra.mxu0 %v603
    %768 = vmatpush.bf16.msra.mxu0 %v599
    %769 = vmatpush.bf16.msra.mxu0 %v595
    %770 = vmatpush.bf16.msra.mxu0 %v591
    %771 = vmatpush.bf16.msra.mxu0 %v587
    %772 = vmatpush.bf16.msra.mxu0 %v583
    %773 = vmatpush.bf16.msra.mxu0 %v579
    %774 = vmatpush.bf16.msra.mxu0 %v575
    %775 = vmatmul.bf16.gmra.mxu0 %v412
    %v776 = vpop.f32.mrf.mxu0
    %v777 = vadd.f32 %v471, %v776
    %v778 = vpop.f32.mrf.mxu0
    %v779 = vadd.f32 %v471, %v778
    %780 = vmatmul.bf16.gmra.mxu0 %v413
    %v781 = vpop.f32.mrf.mxu0
    %v782 = vadd.f32 %v471, %v781
    %v783 = vpop.f32.mrf.mxu0
    %v784 = vadd.f32 %v471, %v783
    %785 = vmatmul.bf16.gmra.mxu0 %v414
    %v786 = vpop.f32.mrf.mxu0
    %v787 = vadd.f32 %v471, %v786
    %v788 = vpop.f32.mrf.mxu0
    %v789 = vadd.f32 %v471, %v788
    %790 = vmatmul.bf16.gmra.mxu0 %v415
    %v791 = vpop.f32.mrf.mxu0
    %v792 = vadd.f32 %v471, %v791
    %v793 = vpop.f32.mrf.mxu0
    %v794 = vadd.f32 %v471, %v793
    %795 = vmatmul.bf16.gmra.mxu0 %v416
    %v796 = vpop.f32.mrf.mxu0
    %v797 = vadd.f32 %v471, %v796
    %v798 = vpop.f32.mrf.mxu0
    %v799 = vadd.f32 %v471, %v798
    %800 = vmatmul.bf16.gmra.mxu0 %v417
    %v801 = vpop.f32.mrf.mxu0
    %v802 = vadd.f32 %v471, %v801
    %v803 = vpop.f32.mrf.mxu0
    %v804 = vadd.f32 %v471, %v803
    %805 = vmatmul.bf16.gmra.mxu0 %v418
    %v806 = vpop.f32.mrf.mxu0
    %v807 = vadd.f32 %v471, %v806
    %v808 = vpop.f32.mrf.mxu0
    %v809 = vadd.f32 %v471, %v808
    %810 = vmatmul.bf16.gmra.mxu0 %v419
    %v811 = vpop.f32.mrf.mxu0
    %v812 = vadd.f32 %v471, %v811
    %v813 = vpop.f32.mrf.mxu0
    %v814 = vadd.f32 %v471, %v813
    %815 = vmatmul.bf16.gmra.mxu0 %v420
    %v816 = vpop.f32.mrf.mxu0
    %v817 = vadd.f32 %v471, %v816
    %v818 = vpop.f32.mrf.mxu0
    %v819 = vadd.f32 %v471, %v818
    %820 = vmatmul.bf16.gmra.mxu0 %v421
    %v821 = vpop.f32.mrf.mxu0
    %v822 = vadd.f32 %v471, %v821
    %v823 = vpop.f32.mrf.mxu0
    %v824 = vadd.f32 %v471, %v823
    %825 = vmatmul.bf16.gmra.mxu0 %v422
    %v826 = vpop.f32.mrf.mxu0
    %v827 = vadd.f32 %v471, %v826
    %v828 = vpop.f32.mrf.mxu0
    %v829 = vadd.f32 %v471, %v828
    %830 = vmatmul.bf16.gmra.mxu0 %v423
    %v831 = vpop.f32.mrf.mxu0
    %v832 = vadd.f32 %v471, %v831
    %v833 = vpop.f32.mrf.mxu0
    %v834 = vadd.f32 %v471, %v833
    %835 = vmatmul.bf16.gmra.mxu0 %v424
    %v836 = vpop.f32.mrf.mxu0
    %v837 = vadd.f32 %v471, %v836
    %v838 = vpop.f32.mrf.mxu0
    %v839 = vadd.f32 %v471, %v838
    %840 = vmatmul.bf16.gmra.mxu0 %v425
    %v841 = vpop.f32.mrf.mxu0
    %v842 = vadd.f32 %v471, %v841
    %v843 = vpop.f32.mrf.mxu0
    %v844 = vadd.f32 %v471, %v843
    %845 = vmatmul.bf16.gmra.mxu0 %v426
    %v846 = vpop.f32.mrf.mxu0
    %v847 = vadd.f32 %v471, %v846
    %v848 = vpop.f32.mrf.mxu0
    %v849 = vadd.f32 %v471, %v848
    %850 = vmatmul.bf16.gmra.mxu0 %v427
    %v851 = vpop.f32.mrf.mxu0
    %v852 = vadd.f32 %v471, %v851
    %v853 = vpop.f32.mrf.mxu0
    %v854 = vadd.f32 %v471, %v853
    %855 = vmatmul.bf16.gmra.mxu0 %v428
    %v856 = vpop.f32.mrf.mxu0
    %v857 = vadd.f32 %v471, %v856
    %v858 = vpop.f32.mrf.mxu0
    %v859 = vadd.f32 %v471, %v858
    %860 = vmatmul.bf16.gmra.mxu0 %v429
    %v861 = vpop.f32.mrf.mxu0
    %v862 = vadd.f32 %v471, %v861
    %v863 = vpop.f32.mrf.mxu0
    %v864 = vadd.f32 %v471, %v863
    %865 = vmatmul.bf16.gmra.mxu0 %v430
    %v866 = vpop.f32.mrf.mxu0
    %v867 = vadd.f32 %v471, %v866
    %v868 = vpop.f32.mrf.mxu0
    %v869 = vadd.f32 %v471, %v868
    %870 = vmatmul.bf16.gmra.mxu0 %v431
    %v871 = vpop.f32.mrf.mxu0
    %v872 = vadd.f32 %v471, %v871
    %v873 = vpop.f32.mrf.mxu0
    %v874 = vadd.f32 %v471, %v873
    %875 = vmatmul.bf16.gmra.mxu0 %v432
    %v876 = vpop.f32.mrf.mxu0
    %v877 = vadd.f32 %v471, %v876
    %v878 = vpop.f32.mrf.mxu0
    %v879 = vadd.f32 %v471, %v878
    %880 = vmatmul.bf16.gmra.mxu0 %v433
    %v881 = vpop.f32.mrf.mxu0
    %v882 = vadd.f32 %v471, %v881
    %v883 = vpop.f32.mrf.mxu0
    %v884 = vadd.f32 %v471, %v883
    %885 = vmatmul.bf16.gmra.mxu0 %v434
    %v886 = vpop.f32.mrf.mxu0
    %v887 = vadd.f32 %v471, %v886
    %v888 = vpop.f32.mrf.mxu0
    %v889 = vadd.f32 %v471, %v888
    %890 = vmatmul.bf16.gmra.mxu0 %v435
    %v891 = vpop.f32.mrf.mxu0
    %v892 = vadd.f32 %v471, %v891
    %v893 = vpop.f32.mrf.mxu0
    %v894 = vadd.f32 %v471, %v893
    %895 = vdwg.mxu0
    %896 = vmatpush.bf16.msra.mxu0 %v604
    %897 = vmatpush.bf16.msra.mxu0 %v600
    %898 = vmatpush.bf16.msra.mxu0 %v596
    %899 = vmatpush.bf16.msra.mxu0 %v592
    %900 = vmatpush.bf16.msra.mxu0 %v588
    %901 = vmatpush.bf16.msra.mxu0 %v584
    %902 = vmatpush.bf16.msra.mxu0 %v580
    %903 = vmatpush.bf16.msra.mxu0 %v576
    %904 = vmatmul.bf16.gmra.mxu0 %v412
    %v905 = vpop.f32.mrf.mxu0
    %v906 = vadd.f32 %v472, %v905
    %v907 = vpop.f32.mrf.mxu0
    %v908 = vadd.f32 %v472, %v907
    %909 = vmatmul.bf16.gmra.mxu0 %v413
    %v910 = vpop.f32.mrf.mxu0
    %v911 = vadd.f32 %v472, %v910
    %v912 = vpop.f32.mrf.mxu0
    %v913 = vadd.f32 %v472, %v912
    %914 = vmatmul.bf16.gmra.mxu0 %v414
    %v915 = vpop.f32.mrf.mxu0
    %v916 = vadd.f32 %v472, %v915
    %v917 = vpop.f32.mrf.mxu0
    %v918 = vadd.f32 %v472, %v917
    %919 = vmatmul.bf16.gmra.mxu0 %v415
    %v920 = vpop.f32.mrf.mxu0
    %v921 = vadd.f32 %v472, %v920
    %v922 = vpop.f32.mrf.mxu0
    %v923 = vadd.f32 %v472, %v922
    %924 = vmatmul.bf16.gmra.mxu0 %v416
    %v925 = vpop.f32.mrf.mxu0
    %v926 = vadd.f32 %v472, %v925
    %v927 = vpop.f32.mrf.mxu0
    %v928 = vadd.f32 %v472, %v927
    %929 = vmatmul.bf16.gmra.mxu0 %v417
    %v930 = vpop.f32.mrf.mxu0
    %v931 = vadd.f32 %v472, %v930
    %v932 = vpop.f32.mrf.mxu0
    %v933 = vadd.f32 %v472, %v932
    %934 = vmatmul.bf16.gmra.mxu0 %v418
    %v935 = vpop.f32.mrf.mxu0
    %v936 = vadd.f32 %v472, %v935
    %v937 = vpop.f32.mrf.mxu0
    %v938 = vadd.f32 %v472, %v937
    %939 = vmatmul.bf16.gmra.mxu0 %v419
    %v940 = vpop.f32.mrf.mxu0
    %v941 = vadd.f32 %v472, %v940
    %v942 = vpop.f32.mrf.mxu0
    %v943 = vadd.f32 %v472, %v942
    %944 = vmatmul.bf16.gmra.mxu0 %v420
    %v945 = vpop.f32.mrf.mxu0
    %v946 = vadd.f32 %v472, %v945
    %v947 = vpop.f32.mrf.mxu0
    %v948 = vadd.f32 %v472, %v947
    %949 = vmatmul.bf16.gmra.mxu0 %v421
    %v950 = vpop.f32.mrf.mxu0
    %v951 = vadd.f32 %v472, %v950
    %v952 = vpop.f32.mrf.mxu0
    %v953 = vadd.f32 %v472, %v952
    %954 = vmatmul.bf16.gmra.mxu0 %v422
    %v955 = vpop.f32.mrf.mxu0
    %v956 = vadd.f32 %v472, %v955
    %v957 = vpop.f32.mrf.mxu0
    %v958 = vadd.f32 %v472, %v957
    %959 = vmatmul.bf16.gmra.mxu0 %v423
    %v960 = vpop.f32.mrf.mxu0
    %v961 = vadd.f32 %v472, %v960
    %v962 = vpop.f32.mrf.mxu0
    %v963 = vadd.f32 %v472, %v962
    %964 = vmatmul.bf16.gmra.mxu0 %v424
    %v965 = vpop.f32.mrf.mxu0
    %v966 = vadd.f32 %v472, %v965
    %v967 = vpop.f32.mrf.mxu0
    %v968 = vadd.f32 %v472, %v967
    %969 = vmatmul.bf16.gmra.mxu0 %v425
    %v970 = vpop.f32.mrf.mxu0
    %v971 = vadd.f32 %v472, %v970
    %v972 = vpop.f32.mrf.mxu0
    %v973 = vadd.f32 %v472, %v972
    %974 = vmatmul.bf16.gmra.mxu0 %v426
    %v975 = vpop.f32.mrf.mxu0
    %v976 = vadd.f32 %v472, %v975
    %v977 = vpop.f32.mrf.mxu0
    %v978 = vadd.f32 %v472, %v977
    %979 = vmatmul.bf16.gmra.mxu0 %v427
    %v980 = vpop.f32.mrf.mxu0
    %v981 = vadd.f32 %v472, %v980
    %v982 = vpop.f32.mrf.mxu0
    %v983 = vadd.f32 %v472, %v982
    %984 = vmatmul.bf16.gmra.mxu0 %v428
    %v985 = vpop.f32.mrf.mxu0
    %v986 = vadd.f32 %v472, %v985
    %v987 = vpop.f32.mrf.mxu0
    %v988 = vadd.f32 %v472, %v987
    %989 = vmatmul.bf16.gmra.mxu0 %v429
    %v990 = vpop.f32.mrf.mxu0
    %v991 = vadd.f32 %v472, %v990
    %v992 = vpop.f32.mrf.mxu0
    %v993 = vadd.f32 %v472, %v992
    %994 = vmatmul.bf16.gmra.mxu0 %v430
    %v995 = vpop.f32.mrf.mxu0
    %v996 = vadd.f32 %v472, %v995
    %v997 = vpop.f32.mrf.mxu0
    %v998 = vadd.f32 %v472, %v997
    %999 = vmatmul.bf16.gmra.mxu0 %v431
    %v1000 = vpop.f32.mrf.mxu0
    %v1001 = vadd.f32 %v472, %v1000
    %v1002 = vpop.f32.mrf.mxu0
    %v1003 = vadd.f32 %v472, %v1002
    %1004 = vmatmul.bf16.gmra.mxu0 %v432
    %v1005 = vpop.f32.mrf.mxu0
    %v1006 = vadd.f32 %v472, %v1005
    %v1007 = vpop.f32.mrf.mxu0
    %v1008 = vadd.f32 %v472, %v1007
    %1009 = vmatmul.bf16.gmra.mxu0 %v433
    %v1010 = vpop.f32.mrf.mxu0
    %v1011 = vadd.f32 %v472, %v1010
    %v1012 = vpop.f32.mrf.mxu0
    %v1013 = vadd.f32 %v472, %v1012
    %1014 = vmatmul.bf16.gmra.mxu0 %v434
    %v1015 = vpop.f32.mrf.mxu0
    %v1016 = vadd.f32 %v472, %v1015
    %v1017 = vpop.f32.mrf.mxu0
    %v1018 = vadd.f32 %v472, %v1017
    %1019 = vmatmul.bf16.gmra.mxu0 %v435
    %v1020 = vpop.f32.mrf.mxu0
    %v1021 = vadd.f32 %v472, %v1020
    %v1022 = vpop.f32.mrf.mxu0
    %v1023 = vadd.f32 %v472, %v1022
    %1024 = vdwg.mxu0
    %1025 = vmatpush.bf16.msra.mxu0 %v605
    %1026 = vmatpush.bf16.msra.mxu0 %v601
    %1027 = vmatpush.bf16.msra.mxu0 %v597
    %1028 = vmatpush.bf16.msra.mxu0 %v593
    %1029 = vmatpush.bf16.msra.mxu0 %v589
    %1030 = vmatpush.bf16.msra.mxu0 %v585
    %1031 = vmatpush.bf16.msra.mxu0 %v581
    %1032 = vmatpush.bf16.msra.mxu0 %v577
    %1033 = vmatmul.bf16.gmra.mxu0 %v412
    %v1034 = vpop.f32.mrf.mxu0
    %v1035 = vadd.f32 %v473, %v1034
    %v1036 = vpop.f32.mrf.mxu0
    %v1037 = vadd.f32 %v473, %v1036
    %1038 = vmatmul.bf16.gmra.mxu0 %v413
    %v1039 = vpop.f32.mrf.mxu0
    %v1040 = vadd.f32 %v473, %v1039
    %v1041 = vpop.f32.mrf.mxu0
    %v1042 = vadd.f32 %v473, %v1041
    %1043 = vmatmul.bf16.gmra.mxu0 %v414
    %v1044 = vpop.f32.mrf.mxu0
    %v1045 = vadd.f32 %v473, %v1044
    %v1046 = vpop.f32.mrf.mxu0
    %v1047 = vadd.f32 %v473, %v1046
    %1048 = vmatmul.bf16.gmra.mxu0 %v415
    %v1049 = vpop.f32.mrf.mxu0
    %v1050 = vadd.f32 %v473, %v1049
    %v1051 = vpop.f32.mrf.mxu0
    %v1052 = vadd.f32 %v473, %v1051
    %1053 = vmatmul.bf16.gmra.mxu0 %v416
    %v1054 = vpop.f32.mrf.mxu0
    %v1055 = vadd.f32 %v473, %v1054
    %v1056 = vpop.f32.mrf.mxu0
    %v1057 = vadd.f32 %v473, %v1056
    %1058 = vmatmul.bf16.gmra.mxu0 %v417
    %v1059 = vpop.f32.mrf.mxu0
    %v1060 = vadd.f32 %v473, %v1059
    %v1061 = vpop.f32.mrf.mxu0
    %v1062 = vadd.f32 %v473, %v1061
    %1063 = vmatmul.bf16.gmra.mxu0 %v418
    %v1064 = vpop.f32.mrf.mxu0
    %v1065 = vadd.f32 %v473, %v1064
    %v1066 = vpop.f32.mrf.mxu0
    %v1067 = vadd.f32 %v473, %v1066
    %1068 = vmatmul.bf16.gmra.mxu0 %v419
    %v1069 = vpop.f32.mrf.mxu0
    %v1070 = vadd.f32 %v473, %v1069
    %v1071 = vpop.f32.mrf.mxu0
    %v1072 = vadd.f32 %v473, %v1071
    %1073 = vmatmul.bf16.gmra.mxu0 %v420
    %v1074 = vpop.f32.mrf.mxu0
    %v1075 = vadd.f32 %v473, %v1074
    %v1076 = vpop.f32.mrf.mxu0
    %v1077 = vadd.f32 %v473, %v1076
    %1078 = vmatmul.bf16.gmra.mxu0 %v421
    %v1079 = vpop.f32.mrf.mxu0
    %v1080 = vadd.f32 %v473, %v1079
    %v1081 = vpop.f32.mrf.mxu0
    %v1082 = vadd.f32 %v473, %v1081
    %1083 = vmatmul.bf16.gmra.mxu0 %v422
    %v1084 = vpop.f32.mrf.mxu0
    %v1085 = vadd.f32 %v473, %v1084
    %v1086 = vpop.f32.mrf.mxu0
    %v1087 = vadd.f32 %v473, %v1086
    %1088 = vmatmul.bf16.gmra.mxu0 %v423
    %v1089 = vpop.f32.mrf.mxu0
    %v1090 = vadd.f32 %v473, %v1089
    %v1091 = vpop.f32.mrf.mxu0
    %v1092 = vadd.f32 %v473, %v1091
    %1093 = vmatmul.bf16.gmra.mxu0 %v424
    %v1094 = vpop.f32.mrf.mxu0
    %v1095 = vadd.f32 %v473, %v1094
    %v1096 = vpop.f32.mrf.mxu0
    %v1097 = vadd.f32 %v473, %v1096
    %1098 = vmatmul.bf16.gmra.mxu0 %v425
    %v1099 = vpop.f32.mrf.mxu0
    %v1100 = vadd.f32 %v473, %v1099
    %v1101 = vpop.f32.mrf.mxu0
    %v1102 = vadd.f32 %v473, %v1101
    %1103 = vmatmul.bf16.gmra.mxu0 %v426
    %v1104 = vpop.f32.mrf.mxu0
    %v1105 = vadd.f32 %v473, %v1104
    %v1106 = vpop.f32.mrf.mxu0
    %v1107 = vadd.f32 %v473, %v1106
    %1108 = vmatmul.bf16.gmra.mxu0 %v427
    %v1109 = vpop.f32.mrf.mxu0
    %v1110 = vadd.f32 %v473, %v1109
    %v1111 = vpop.f32.mrf.mxu0
    %v1112 = vadd.f32 %v473, %v1111
    %1113 = vmatmul.bf16.gmra.mxu0 %v428
    %v1114 = vpop.f32.mrf.mxu0
    %v1115 = vadd.f32 %v473, %v1114
    %v1116 = vpop.f32.mrf.mxu0
    %v1117 = vadd.f32 %v473, %v1116
    %1118 = vmatmul.bf16.gmra.mxu0 %v429
    %v1119 = vpop.f32.mrf.mxu0
    %v1120 = vadd.f32 %v473, %v1119
    %v1121 = vpop.f32.mrf.mxu0
    %v1122 = vadd.f32 %v473, %v1121
    %1123 = vmatmul.bf16.gmra.mxu0 %v430
    %v1124 = vpop.f32.mrf.mxu0
    %v1125 = vadd.f32 %v473, %v1124
    %v1126 = vpop.f32.mrf.mxu0
    %v1127 = vadd.f32 %v473, %v1126
    %1128 = vmatmul.bf16.gmra.mxu0 %v431
    %v1129 = vpop.f32.mrf.mxu0
    %v1130 = vadd.f32 %v473, %v1129
    %v1131 = vpop.f32.mrf.mxu0
    %v1132 = vadd.f32 %v473, %v1131
    %1133 = vmatmul.bf16.gmra.mxu0 %v432
    %v1134 = vpop.f32.mrf.mxu0
    %v1135 = vadd.f32 %v473, %v1134
    %v1136 = vpop.f32.mrf.mxu0
    %v1137 = vadd.f32 %v473, %v1136
    %1138 = vmatmul.bf16.gmra.mxu0 %v433
    %v1139 = vpop.f32.mrf.mxu0
    %v1140 = vadd.f32 %v473, %v1139
    %v1141 = vpop.f32.mrf.mxu0
    %v1142 = vadd.f32 %v473, %v1141
    %1143 = vmatmul.bf16.gmra.mxu0 %v434
    %v1144 = vpop.f32.mrf.mxu0
    %v1145 = vadd.f32 %v473, %v1144
    %v1146 = vpop.f32.mrf.mxu0
    %v1147 = vadd.f32 %v473, %v1146
    %1148 = vmatmul.bf16.gmra.mxu0 %v435
    %v1149 = vpop.f32.mrf.mxu0
    %v1150 = vadd.f32 %v473, %v1149
    %v1151 = vpop.f32.mrf.mxu0
    %v1152 = vadd.f32 %v473, %v1151
    %1153 = vdwg.mxu0
    %v1154 = vtanh.pop %v648
    %v1155 = vtanh.pop %v777
    %v1156 = vtanh.pop %v650
    %v1157 = vtanh.pop %v779
    %v1158 = vtanh.pop %v653
    %v1159 = vtanh.pop %v782
    %v1160 = vtanh.pop %v655
    %v1161 = vtanh.pop %v784
    %v1162 = vtanh.pop %v658
    %v1163 = vtanh.pop %v787
    %v1164 = vtanh.pop %v660
    %v1165 = vtanh.pop %v789
    %v1166 = vtanh.pop %v663
    %v1167 = vtanh.pop %v792
    %v1168 = vtanh.pop %v665
    %v1169 = vtanh.pop %v794
    %v1170 = vtanh.pop %v668
    %v1171 = vtanh.pop %v797
    %v1172 = vtanh.pop %v670
    %v1173 = vtanh.pop %v799
    %v1174 = vtanh.pop %v673
    %v1175 = vtanh.pop %v802
    %v1176 = vtanh.pop %v675
    %v1177 = vtanh.pop %v804
    %v1178 = vtanh.pop %v678
    %v1179 = vtanh.pop %v807
    %v1180 = vtanh.pop %v680
    %v1181 = vtanh.pop %v809
    %v1182 = vtanh.pop %v683
    %v1183 = vtanh.pop %v812
    %v1184 = vtanh.pop %v685
    %v1185 = vtanh.pop %v814
    %v1186 = vtanh.pop %v688
    %v1187 = vtanh.pop %v817
    %v1188 = vtanh.pop %v690
    %v1189 = vtanh.pop %v819
    %v1190 = vtanh.pop %v693
    %v1191 = vtanh.pop %v822
    %v1192 = vtanh.pop %v695
    %v1193 = vtanh.pop %v824
    %v1194 = vtanh.pop %v698
    %v1195 = vtanh.pop %v827
    %v1196 = vtanh.pop %v700
    %v1197 = vtanh.pop %v829
    %v1198 = vtanh.pop %v703
    %v1199 = vtanh.pop %v832
    %v1200 = vtanh.pop %v705
    %v1201 = vtanh.pop %v834
    %v1202 = vtanh.pop %v708
    %v1203 = vtanh.pop %v837
    %v1204 = vtanh.pop %v710
    %v1205 = vtanh.pop %v839
    %v1206 = vtanh.pop %v713
    %v1207 = vtanh.pop %v842
    %v1208 = vtanh.pop %v715
    %v1209 = vtanh.pop %v844
    %v1210 = vtanh.pop %v718
    %v1211 = vtanh.pop %v847
    %v1212 = vtanh.pop %v720
    %v1213 = vtanh.pop %v849
    %v1214 = vtanh.pop %v723
    %v1215 = vtanh.pop %v852
    %v1216 = vtanh.pop %v725
    %v1217 = vtanh.pop %v854
    %v1218 = vtanh.pop %v728
    %v1219 = vtanh.pop %v857
    %v1220 = vtanh.pop %v730
    %v1221 = vtanh.pop %v859
    %v1222 = vtanh.pop %v733
    %v1223 = vtanh.pop %v862
    %v1224 = vtanh.pop %v735
    %v1225 = vtanh.pop %v864
    %v1226 = vtanh.pop %v738
    %v1227 = vtanh.pop %v867
    %v1228 = vtanh.pop %v740
    %v1229 = vtanh.pop %v869
    %v1230 = vtanh.pop %v743
    %v1231 = vtanh.pop %v872
    %v1232 = vtanh.pop %v745
    %v1233 = vtanh.pop %v874
    %v1234 = vtanh.pop %v748
    %v1235 = vtanh.pop %v877
    %v1236 = vtanh.pop %v750
    %v1237 = vtanh.pop %v879
    %v1238 = vtanh.pop %v753
    %v1239 = vtanh.pop %v882
    %v1240 = vtanh.pop %v755
    %v1241 = vtanh.pop %v884
    %v1242 = vtanh.pop %v758
    %v1243 = vtanh.pop %v887
    %v1244 = vtanh.pop %v760
    %v1245 = vtanh.pop %v889
    %v1246 = vtanh.pop %v763
    %v1247 = vtanh.pop %v892
    %v1248 = vtanh.pop %v765
    %v1249 = vtanh.pop %v894
    %v1250 = vmul.f32 %v906, 0.5
    %v1251 = vmul.f32 %v1035, 0.5
    %v1252 = vmul.f32 %v908, 0.5
    %v1253 = vmul.f32 %v1037, 0.5
    %v1254 = vmul.f32 %v911, 0.5
    %v1255 = vmul.f32 %v1040, 0.5
    %v1256 = vmul.f32 %v913, 0.5
    %v1257 = vmul.f32 %v1042, 0.5
    %v1258 = vmul.f32 %v916, 0.5
    %v1259 = vmul.f32 %v1045, 0.5
    %v1260 = vmul.f32 %v918, 0.5
    %v1261 = vmul.f32 %v1047, 0.5
    %v1262 = vmul.f32 %v921, 0.5
    %v1263 = vmul.f32 %v1050, 0.5
    %v1264 = vmul.f32 %v923, 0.5
    %v1265 = vmul.f32 %v1052, 0.5
    %v1266 = vmul.f32 %v926, 0.5
    %v1267 = vmul.f32 %v1055, 0.5
    %v1268 = vmul.f32 %v928, 0.5
    %v1269 = vmul.f32 %v1057, 0.5
    %v1270 = vmul.f32 %v931, 0.5
    %v1271 = vmul.f32 %v1060, 0.5
    %v1272 = vmul.f32 %v933, 0.5
    %v1273 = vmul.f32 %v1062, 0.5
    %v1274 = vmul.f32 %v936, 0.5
    %v1275 = vmul.f32 %v1065, 0.5
    %v1276 = vmul.f32 %v938, 0.5
    %v1277 = vmul.f32 %v1067, 0.5
    %v1278 = vmul.f32 %v941, 0.5
    %v1279 = vmul.f32 %v1070, 0.5
    %v1280 = vmul.f32 %v943, 0.5
    %v1281 = vmul.f32 %v1072, 0.5
    %v1282 = vmul.f32 %v946, 0.5
    %v1283 = vmul.f32 %v1075, 0.5
    %v1284 = vmul.f32 %v948, 0.5
    %v1285 = vmul.f32 %v1077, 0.5
    %v1286 = vmul.f32 %v951, 0.5
    %v1287 = vmul.f32 %v1080, 0.5
    %v1288 = vmul.f32 %v953, 0.5
    %v1289 = vmul.f32 %v1082, 0.5
    %v1290 = vmul.f32 %v956, 0.5
    %v1291 = vmul.f32 %v1085, 0.5
    %v1292 = vmul.f32 %v958, 0.5
    %v1293 = vmul.f32 %v1087, 0.5
    %v1294 = vmul.f32 %v961, 0.5
    %v1295 = vmul.f32 %v1090, 0.5
    %v1296 = vmul.f32 %v963, 0.5
    %v1297 = vmul.f32 %v1092, 0.5
    %v1298 = vmul.f32 %v966, 0.5
    %v1299 = vmul.f32 %v1095, 0.5
    %v1300 = vmul.f32 %v968, 0.5
    %v1301 = vmul.f32 %v1097, 0.5
    %v1302 = vmul.f32 %v971, 0.5
    %v1303 = vmul.f32 %v1100, 0.5
    %v1304 = vmul.f32 %v973, 0.5
    %v1305 = vmul.f32 %v1102, 0.5
    %v1306 = vmul.f32 %v976, 0.5
    %v1307 = vmul.f32 %v1105, 0.5
    %v1308 = vmul.f32 %v978, 0.5
    %v1309 = vmul.f32 %v1107, 0.5
    %v1310 = vmul.f32 %v981, 0.5
    %v1311 = vmul.f32 %v1110, 0.5
    %v1312 = vmul.f32 %v983, 0.5
    %v1313 = vmul.f32 %v1112, 0.5
    %v1314 = vmul.f32 %v986, 0.5
    %v1315 = vmul.f32 %v1115, 0.5
    %v1316 = vmul.f32 %v988, 0.5
    %v1317 = vmul.f32 %v1117, 0.5
    %v1318 = vmul.f32 %v991, 0.5
    %v1319 = vmul.f32 %v1120, 0.5
    %v1320 = vmul.f32 %v993, 0.5
    %v1321 = vmul.f32 %v1122, 0.5
    %v1322 = vmul.f32 %v996, 0.5
    %v1323 = vmul.f32 %v1125, 0.5
    %v1324 = vmul.f32 %v998, 0.5
    %v1325 = vmul.f32 %v1127, 0.5
    %v1326 = vmul.f32 %v1001, 0.5
    %v1327 = vmul.f32 %v1130, 0.5
    %v1328 = vmul.f32 %v1003, 0.5
    %v1329 = vmul.f32 %v1132, 0.5
    %v1330 = vmul.f32 %v1006, 0.5
    %v1331 = vmul.f32 %v1135, 0.5
    %v1332 = vmul.f32 %v1008, 0.5
    %v1333 = vmul.f32 %v1137, 0.5
    %v1334 = vmul.f32 %v1011, 0.5
    %v1335 = vmul.f32 %v1140, 0.5
    %v1336 = vmul.f32 %v1013, 0.5
    %v1337 = vmul.f32 %v1142, 0.5
    %v1338 = vmul.f32 %v1016, 0.5
    %v1339 = vmul.f32 %v1145, 0.5
    %v1340 = vmul.f32 %v1018, 0.5
    %v1341 = vmul.f32 %v1147, 0.5
    %v1342 = vmul.f32 %v1021, 0.5
    %v1343 = vmul.f32 %v1150, 0.5
    %v1344 = vmul.f32 %v1023, 0.5
    %v1345 = vmul.f32 %v1152, 0.5
    %v1346 = vtanh.pop %v1250
    %v1347 = vtanh.pop %v1251
    %v1348 = vtanh.pop %v1252
    %v1349 = vtanh.pop %v1253
    %v1350 = vtanh.pop %v1254
    %v1351 = vtanh.pop %v1255
    %v1352 = vtanh.pop %v1256
    %v1353 = vtanh.pop %v1257
    %v1354 = vtanh.pop %v1258
    %v1355 = vtanh.pop %v1259
    %v1356 = vtanh.pop %v1260
    %v1357 = vtanh.pop %v1261
    %v1358 = vtanh.pop %v1262
    %v1359 = vtanh.pop %v1263
    %v1360 = vtanh.pop %v1264
    %v1361 = vtanh.pop %v1265
    %v1362 = vtanh.pop %v1266
    %v1363 = vtanh.pop %v1267
    %v1364 = vtanh.pop %v1268
    %v1365 = vtanh.pop %v1269
    %v1366 = vtanh.pop %v1270
    %v1367 = vtanh.pop %v1271
    %v1368 = vtanh.pop %v1272
    %v1369 = vtanh.pop %v1273
    %v1370 = vtanh.pop %v1274
    %v1371 = vtanh.pop %v1275
    %v1372 = vtanh.pop %v1276
    %v1373 = vtanh.pop %v1277
    %v1374 = vtanh.pop %v1278
    %v1375 = vtanh.pop %v1279
    %v1376 = vtanh.pop %v1280
    %v1377 = vtanh.pop %v1281
    %v1378 = vtanh.pop %v1282
    %v1379 = vtanh.pop %v1283
    %v1380 = vtanh.pop %v1284
    %v1381 = vtanh.pop %v1285
    %v1382 = vtanh.pop %v1286
    %v1383 = vtanh.pop %v1287
    %v1384 = vtanh.pop %v1288
    %v1385 = vtanh.pop %v1289
    %v1386 = vtanh.pop %v1290
    %v1387 = vtanh.pop %v1291
    %v1388 = vtanh.pop %v1292
    %v1389 = vtanh.pop %v1293
    %v1390 = vtanh.pop %v1294
    %v1391 = vtanh.pop %v1295
    %v1392 = vtanh.pop %v1296
    %v1393 = vtanh.pop %v1297
    %v1394 = vtanh.pop %v1298
    %v1395 = vtanh.pop %v1299
    %v1396 = vtanh.pop %v1300
    %v1397 = vtanh.pop %v1301
    %v1398 = vtanh.pop %v1302
    %v1399 = vtanh.pop %v1303
    %v1400 = vtanh.pop %v1304
    %v1401 = vtanh.pop %v1305
    %v1402 = vtanh.pop %v1306
    %v1403 = vtanh.pop %v1307
    %v1404 = vtanh.pop %v1308
    %v1405 = vtanh.pop %v1309
    %v1406 = vtanh.pop %v1310
    %v1407 = vtanh.pop %v1311
    %v1408 = vtanh.pop %v1312
    %v1409 = vtanh.pop %v1313
    %v1410 = vtanh.pop %v1314
    %v1411 = vtanh.pop %v1315
    %v1412 = vtanh.pop %v1316
    %v1413 = vtanh.pop %v1317
    %v1414 = vtanh.pop %v1318
    %v1415 = vtanh.pop %v1319
    %v1416 = vtanh.pop %v1320
    %v1417 = vtanh.pop %v1321
    %v1418 = vtanh.pop %v1322
    %v1419 = vtanh.pop %v1323
    %v1420 = vtanh.pop %v1324
    %v1421 = vtanh.pop %v1325
    %v1422 = vtanh.pop %v1326
    %v1423 = vtanh.pop %v1327
    %v1424 = vtanh.pop %v1328
    %v1425 = vtanh.pop %v1329
    %v1426 = vtanh.pop %v1330
    %v1427 = vtanh.pop %v1331
    %v1428 = vtanh.pop %v1332
    %v1429 = vtanh.pop %v1333
    %v1430 = vtanh.pop %v1334
    %v1431 = vtanh.pop %v1335
    %v1432 = vtanh.pop %v1336
    %v1433 = vtanh.pop %v1337
    %v1434 = vtanh.pop %v1338
    %v1435 = vtanh.pop %v1339
    %v1436 = vtanh.pop %v1340
    %v1437 = vtanh.pop %v1341
    %v1438 = vtanh.pop %v1342
    %v1439 = vtanh.pop %v1343
    %v1440 = vtanh.pop %v1344
    %v1441 = vtanh.pop %v1345
    %v1442 = vadd.f32 %v1346, 1.0
    %v1443 = vadd.f32 %v1347, 1.0
    %v1444 = vadd.f32 %v1348, 1.0
    %v1445 = vadd.f32 %v1349, 1.0
    %v1446 = vadd.f32 %v1350, 1.0
    %v1447 = vadd.f32 %v1351, 1.0
    %v1448 = vadd.f32 %v1352, 1.0
    %v1449 = vadd.f32 %v1353, 1.0
    %v1450 = vadd.f32 %v1354, 1.0
    %v1451 = vadd.f32 %v1355, 1.0
    %v1452 = vadd.f32 %v1356, 1.0
    %v1453 = vadd.f32 %v1357, 1.0
    %v1454 = vadd.f32 %v1358, 1.0
    %v1455 = vadd.f32 %v1359, 1.0
    %v1456 = vadd.f32 %v1360, 1.0
    %v1457 = vadd.f32 %v1361, 1.0
    %v1458 = vadd.f32 %v1362, 1.0
    %v1459 = vadd.f32 %v1363, 1.0
    %v1460 = vadd.f32 %v1364, 1.0
    %v1461 = vadd.f32 %v1365, 1.0
    %v1462 = vadd.f32 %v1366, 1.0
    %v1463 = vadd.f32 %v1367, 1.0
    %v1464 = vadd.f32 %v1368, 1.0
    %v1465 = vadd.f32 %v1369, 1.0
    %v1466 = vadd.f32 %v1370, 1.0
    %v1467 = vadd.f32 %v1371, 1.0
    %v1468 = vadd.f32 %v1372, 1.0
    %v1469 = vadd.f32 %v1373, 1.0
    %v1470 = vadd.f32 %v1374, 1.0
    %v1471 = vadd.f32 %v1375, 1.0
    %v1472 = vadd.f32 %v1376, 1.0
    %v1473 = vadd.f32 %v1377, 1.0
    %v1474 = vadd.f32 %v1378, 1.0
    %v1475 = vadd.f32 %v1379, 1.0
    %v1476 = vadd.f32 %v1380, 1.0
    %v1477 = vadd.f32 %v1381, 1.0
    %v1478 = vadd.f32 %v1382, 1.0
    %v1479 = vadd.f32 %v1383, 1.0
    %v1480 = vadd.f32 %v1384, 1.0
    %v1481 = vadd.f32 %v1385, 1.0
    %v1482 = vadd.f32 %v1386, 1.0
    %v1483 = vadd.f32 %v1387, 1.0
    %v1484 = vadd.f32 %v1388, 1.0
    %v1485 = vadd.f32 %v1389, 1.0
    %v1486 = vadd.f32 %v1390, 1.0
    %v1487 = vadd.f32 %v1391, 1.0
    %v1488 = vadd.f32 %v1392, 1.0
    %v1489 = vadd.f32 %v1393, 1.0
    %v1490 = vadd.f32 %v1394, 1.0
    %v1491 = vadd.f32 %v1395, 1.0
    %v1492 = vadd.f32 %v1396, 1.0
    %v1493 = vadd.f32 %v1397, 1.0
    %v1494 = vadd.f32 %v1398, 1.0
    %v1495 = vadd.f32 %v1399, 1.0
    %v1496 = vadd.f32 %v1400, 1.0
    %v1497 = vadd.f32 %v1401, 1.0
    %v1498 = vadd.f32 %v1402, 1.0
    %v1499 = vadd.f32 %v1403, 1.0
    %v1500 = vadd.f32 %v1404, 1.0
    %v1501 = vadd.f32 %v1405, 1.0
    %v1502 = vadd.f32 %v1406, 1.0
    %v1503 = vadd.f32 %v1407, 1.0
    %v1504 = vadd.f32 %v1408, 1.0
    %v1505 = vadd.f32 %v1409, 1.0
    %v1506 = vadd.f32 %v1410, 1.0
    %v1507 = vadd.f32 %v1411, 1.0
    %v1508 = vadd.f32 %v1412, 1.0
    %v1509 = vadd.f32 %v1413, 1.0
    %v1510 = vadd.f32 %v1414, 1.0
    %v1511 = vadd.f32 %v1415, 1.0
    %v1512 = vadd.f32 %v1416, 1.0
    %v1513 = vadd.f32 %v1417, 1.0
    %v1514 = vadd.f32 %v1418, 1.0
    %v1515 = vadd.f32 %v1419, 1.0
    %v1516 = vadd.f32 %v1420, 1.0
    %v1517 = vadd.f32 %v1421, 1.0
    %v1518 = vadd.f32 %v1422, 1.0
    %v1519 = vadd.f32 %v1423, 1.0
    %v1520 = vadd.f32 %v1424, 1.0
    %v1521 = vadd.f32 %v1425, 1.0
    %v1522 = vadd.f32 %v1426, 1.0
    %v1523 = vadd.f32 %v1427, 1.0
    %v1524 = vadd.f32 %v1428, 1.0
    %v1525 = vadd.f32 %v1429, 1.0
    %v1526 = vadd.f32 %v1430, 1.0
    %v1527 = vadd.f32 %v1431, 1.0
    %v1528 = vadd.f32 %v1432, 1.0
    %v1529 = vadd.f32 %v1433, 1.0
    %v1530 = vadd.f32 %v1434, 1.0
    %v1531 = vadd.f32 %v1435, 1.0
    %v1532 = vadd.f32 %v1436, 1.0
    %v1533 = vadd.f32 %v1437, 1.0
    %v1534 = vadd.f32 %v1438, 1.0
    %v1535 = vadd.f32 %v1439, 1.0
    %v1536 = vadd.f32 %v1440, 1.0
    %v1537 = vadd.f32 %v1441, 1.0
    %v1538 = vmul.f32 %v1442, 0.5
    %v1539 = vmul.f32 %v1443, 0.5
    %v1540 = vmul.f32 %v1444, 0.5
    %v1541 = vmul.f32 %v1445, 0.5
    %v1542 = vmul.f32 %v1446, 0.5
    %v1543 = vmul.f32 %v1447, 0.5
    %v1544 = vmul.f32 %v1448, 0.5
    %v1545 = vmul.f32 %v1449, 0.5
    %v1546 = vmul.f32 %v1450, 0.5
    %v1547 = vmul.f32 %v1451, 0.5
    %v1548 = vmul.f32 %v1452, 0.5
    %v1549 = vmul.f32 %v1453, 0.5
    %v1550 = vmul.f32 %v1454, 0.5
    %v1551 = vmul.f32 %v1455, 0.5
    %v1552 = vmul.f32 %v1456, 0.5
    %v1553 = vmul.f32 %v1457, 0.5
    %v1554 = vmul.f32 %v1458, 0.5
    %v1555 = vmul.f32 %v1459, 0.5
    %v1556 = vmul.f32 %v1460, 0.5
    %v1557 = vmul.f32 %v1461, 0.5
    %v1558 = vmul.f32 %v1462, 0.5
    %v1559 = vmul.f32 %v1463, 0.5
    %v1560 = vmul.f32 %v1464, 0.5
    %v1561 = vmul.f32 %v1465, 0.5
    %v1562 = vmul.f32 %v1466, 0.5
    %v1563 = vmul.f32 %v1467, 0.5
    %v1564 = vmul.f32 %v1468, 0.5
    %v1565 = vmul.f32 %v1469, 0.5
    %v1566 = vmul.f32 %v1470, 0.5
    %v1567 = vmul.f32 %v1471, 0.5
    %v1568 = vmul.f32 %v1472, 0.5
    %v1569 = vmul.f32 %v1473, 0.5
    %v1570 = vmul.f32 %v1474, 0.5
    %v1571 = vmul.f32 %v1475, 0.5
    %v1572 = vmul.f32 %v1476, 0.5
    %v1573 = vmul.f32 %v1477, 0.5
    %v1574 = vmul.f32 %v1478, 0.5
    %v1575 = vmul.f32 %v1479, 0.5
    %v1576 = vmul.f32 %v1480, 0.5
    %v1577 = vmul.f32 %v1481, 0.5
    %v1578 = vmul.f32 %v1482, 0.5
    %v1579 = vmul.f32 %v1483, 0.5
    %v1580 = vmul.f32 %v1484, 0.5
    %v1581 = vmul.f32 %v1485, 0.5
    %v1582 = vmul.f32 %v1486, 0.5
    %v1583 = vmul.f32 %v1487, 0.5
    %v1584 = vmul.f32 %v1488, 0.5
    %v1585 = vmul.f32 %v1489, 0.5
    %v1586 = vmul.f32 %v1490, 0.5
    %v1587 = vmul.f32 %v1491, 0.5
    %v1588 = vmul.f32 %v1492, 0.5
    %v1589 = vmul.f32 %v1493, 0.5
    %v1590 = vmul.f32 %v1494, 0.5
    %v1591 = vmul.f32 %v1495, 0.5
    %v1592 = vmul.f32 %v1496, 0.5
    %v1593 = vmul.f32 %v1497, 0.5
    %v1594 = vmul.f32 %v1498, 0.5
    %v1595 = vmul.f32 %v1499, 0.5
    %v1596 = vmul.f32 %v1500, 0.5
    %v1597 = vmul.f32 %v1501, 0.5
    %v1598 = vmul.f32 %v1502, 0.5
    %v1599 = vmul.f32 %v1503, 0.5
    %v1600 = vmul.f32 %v1504, 0.5
    %v1601 = vmul.f32 %v1505, 0.5
    %v1602 = vmul.f32 %v1506, 0.5
    %v1603 = vmul.f32 %v1507, 0.5
    %v1604 = vmul.f32 %v1508, 0.5
    %v1605 = vmul.f32 %v1509, 0.5
    %v1606 = vmul.f32 %v1510, 0.5
    %v1607 = vmul.f32 %v1511, 0.5
    %v1608 = vmul.f32 %v1512, 0.5
    %v1609 = vmul.f32 %v1513, 0.5
    %v1610 = vmul.f32 %v1514, 0.5
    %v1611 = vmul.f32 %v1515, 0.5
    %v1612 = vmul.f32 %v1516, 0.5
    %v1613 = vmul.f32 %v1517, 0.5
    %v1614 = vmul.f32 %v1518, 0.5
    %v1615 = vmul.f32 %v1519, 0.5
    %v1616 = vmul.f32 %v1520, 0.5
    %v1617 = vmul.f32 %v1521, 0.5
    %v1618 = vmul.f32 %v1522, 0.5
    %v1619 = vmul.f32 %v1523, 0.5
    %v1620 = vmul.f32 %v1524, 0.5
    %v1621 = vmul.f32 %v1525, 0.5
    %v1622 = vmul.f32 %v1526, 0.5
    %v1623 = vmul.f32 %v1527, 0.5
    %v1624 = vmul.f32 %v1528, 0.5
    %v1625 = vmul.f32 %v1529, 0.5
    %v1626 = vmul.f32 %v1530, 0.5
    %v1627 = vmul.f32 %v1531, 0.5
    %v1628 = vmul.f32 %v1532, 0.5
    %v1629 = vmul.f32 %v1533, 0.5
    %v1630 = vmul.f32 %v1534, 0.5
    %v1631 = vmul.f32 %v1535, 0.5
    %v1632 = vmul.f32 %v1536, 0.5
    %v1633 = vmul.f32 %v1537, 0.5
    %v1634 = vmul.f32 %v1154, %v1538
    %v1635 = vmul.f32 %v1155, %v1539
    %v1636 = vmul.f32 %v1156, %v1540
    %v1637 = vmul.f32 %v1157, %v1541
    %v1638 = vmul.f32 %v1158, %v1542
    %v1639 = vmul.f32 %v1159, %v1543
    %v1640 = vmul.f32 %v1160, %v1544
    %v1641 = vmul.f32 %v1161, %v1545
    %v1642 = vmul.f32 %v1162, %v1546
    %v1643 = vmul.f32 %v1163, %v1547
    %v1644 = vmul.f32 %v1164, %v1548
    %v1645 = vmul.f32 %v1165, %v1549
    %v1646 = vmul.f32 %v1166, %v1550
    %v1647 = vmul.f32 %v1167, %v1551
    %v1648 = vmul.f32 %v1168, %v1552
    %v1649 = vmul.f32 %v1169, %v1553
    %v1650 = vmul.f32 %v1170, %v1554
    %v1651 = vmul.f32 %v1171, %v1555
    %v1652 = vmul.f32 %v1172, %v1556
    %v1653 = vmul.f32 %v1173, %v1557
    %v1654 = vmul.f32 %v1174, %v1558
    %v1655 = vmul.f32 %v1175, %v1559
    %v1656 = vmul.f32 %v1176, %v1560
    %v1657 = vmul.f32 %v1177, %v1561
    %v1658 = vmul.f32 %v1178, %v1562
    %v1659 = vmul.f32 %v1179, %v1563
    %v1660 = vmul.f32 %v1180, %v1564
    %v1661 = vmul.f32 %v1181, %v1565
    %v1662 = vmul.f32 %v1182, %v1566
    %v1663 = vmul.f32 %v1183, %v1567
    %v1664 = vmul.f32 %v1184, %v1568
    %v1665 = vmul.f32 %v1185, %v1569
    %v1666 = vmul.f32 %v1186, %v1570
    %v1667 = vmul.f32 %v1187, %v1571
    %v1668 = vmul.f32 %v1188, %v1572
    %v1669 = vmul.f32 %v1189, %v1573
    %v1670 = vmul.f32 %v1190, %v1574
    %v1671 = vmul.f32 %v1191, %v1575
    %v1672 = vmul.f32 %v1192, %v1576
    %v1673 = vmul.f32 %v1193, %v1577
    %v1674 = vmul.f32 %v1194, %v1578
    %v1675 = vmul.f32 %v1195, %v1579
    %v1676 = vmul.f32 %v1196, %v1580
    %v1677 = vmul.f32 %v1197, %v1581
    %v1678 = vmul.f32 %v1198, %v1582
    %v1679 = vmul.f32 %v1199, %v1583
    %v1680 = vmul.f32 %v1200, %v1584
    %v1681 = vmul.f32 %v1201, %v1585
    %v1682 = vmul.f32 %v1202, %v1586
    %v1683 = vmul.f32 %v1203, %v1587
    %v1684 = vmul.f32 %v1204, %v1588
    %v1685 = vmul.f32 %v1205, %v1589
    %v1686 = vmul.f32 %v1206, %v1590
    %v1687 = vmul.f32 %v1207, %v1591
    %v1688 = vmul.f32 %v1208, %v1592
    %v1689 = vmul.f32 %v1209, %v1593
    %v1690 = vmul.f32 %v1210, %v1594
    %v1691 = vmul.f32 %v1211, %v1595
    %v1692 = vmul.f32 %v1212, %v1596
    %v1693 = vmul.f32 %v1213, %v1597
    %v1694 = vmul.f32 %v1214, %v1598
    %v1695 = vmul.f32 %v1215, %v1599
    %v1696 = vmul.f32 %v1216, %v1600
    %v1697 = vmul.f32 %v1217, %v1601
    %v1698 = vmul.f32 %v1218, %v1602
    %v1699 = vmul.f32 %v1219, %v1603
    %v1700 = vmul.f32 %v1220, %v1604
    %v1701 = vmul.f32 %v1221, %v1605
    %v1702 = vmul.f32 %v1222, %v1606
    %v1703 = vmul.f32 %v1223, %v1607
    %v1704 = vmul.f32 %v1224, %v1608
    %v1705 = vmul.f32 %v1225, %v1609
    %v1706 = vmul.f32 %v1226, %v1610
    %v1707 = vmul.f32 %v1227, %v1611
    %v1708 = vmul.f32 %v1228, %v1612
    %v1709 = vmul.f32 %v1229, %v1613
    %v1710 = vmul.f32 %v1230, %v1614
    %v1711 = vmul.f32 %v1231, %v1615
    %v1712 = vmul.f32 %v1232, %v1616
    %v1713 = vmul.f32 %v1233, %v1617
    %v1714 = vmul.f32 %v1234, %v1618
    %v1715 = vmul.f32 %v1235, %v1619
    %v1716 = vmul.f32 %v1236, %v1620
    %v1717 = vmul.f32 %v1237, %v1621
    %v1718 = vmul.f32 %v1238, %v1622
    %v1719 = vmul.f32 %v1239, %v1623
    %v1720 = vmul.f32 %v1240, %v1624
    %v1721 = vmul.f32 %v1241, %v1625
    %v1722 = vmul.f32 %v1242, %v1626
    %v1723 = vmul.f32 %v1243, %v1627
    %v1724 = vmul.f32 %v1244, %v1628
    %v1725 = vmul.f32 %v1245, %v1629
    %v1726 = vmul.f32 %v1246, %v1630
    %v1727 = vmul.f32 %v1247, %v1631
    %v1728 = vmul.f32 %v1248, %v1632
    %v1729 = vmul.f32 %v1249, %v1633
    %v1730 = vld [vmem:[%s3] sm:$0x3]
    %s1731 = sld [smem:[#allocation5]]
    %v1732 = vstv %s1731
    %v1734 = vperm.slane %v1730, 0
    %v1735 = vperm.slane %v1730, 1
    %1738 = vmatpush.xpose.msra.mxu0 %v1664
    %1739 = vmatpush.xpose.msra.mxu0 %v1662
    %1740 = vmatpush.xpose.msra.mxu0 %v1660
    %1741 = vmatpush.xpose.msra.mxu0 %v1658
    %1742 = vmatpush.xpose.msra.mxu0 %v1656
    %1743 = vmatpush.xpose.msra.mxu0 %v1654
    %1744 = vmatpush.xpose.msra.mxu0 %v1652
    %1745 = vmatpush.xpose.msra.mxu0 %v1650
    %1746 = vmatpush.xpose.msra.mxu0 %v1648
    %1747 = vmatpush.xpose.msra.mxu0 %v1646
    %1748 = vmatpush.xpose.msra.mxu0 %v1644
    %1749 = vmatpush.xpose.msra.mxu0 %v1642
    %1750 = vmatpush.xpose.msra.mxu0 %v1640
    %1751 = vmatpush.xpose.msra.mxu0 %v1638
    %1752 = vmatpush.xpose.msra.mxu0 %v1636
    %1753 = vmatpush.xpose.msra.mxu0 %v1634
    %1754 = vmatmul.f32.gmra.mxu0 %v1734
    %v1755 = vpop.f32.mrf.mxu0
    %v1756 = vadd.f32 %v1732, %v1755
    %1757 = vdwg.mxu0
    %1758 = vmatpush.xpose.msra.mxu0 %v1665
    %1759 = vmatpush.xpose.msra.mxu0 %v1663
    %1760 = vmatpush.xpose.msra.mxu0 %v1661
    %1761 = vmatpush.xpose.msra.mxu0 %v1659
    %1762 = vmatpush.xpose.msra.mxu0 %v1657
    %1763 = vmatpush.xpose.msra.mxu0 %v1655
    %1764 = vmatpush.xpose.msra.mxu0 %v1653
    %1765 = vmatpush.xpose.msra.mxu0 %v1651
    %1766 = vmatpush.xpose.msra.mxu0 %v1649
    %1767 = vmatpush.xpose.msra.mxu0 %v1647
    %1768 = vmatpush.xpose.msra.mxu0 %v1645
    %1769 = vmatpush.xpose.msra.mxu0 %v1643
    %1770 = vmatpush.xpose.msra.mxu0 %v1641
    %1771 = vmatpush.xpose.msra.mxu0 %v1639
    %1772 = vmatpush.xpose.msra.mxu0 %v1637
    %1773 = vmatpush.xpose.msra.mxu0 %v1635
    %1774 = vmatmul.f32.gmra.mxu0 %v1735
    %v1775 = vpop.f32.mrf.mxu0
    %v1776 = vadd.f32 %v1756, %v1775
    %1777 = vdwg.mxu0
    %1778 = vmatpush.xpose.msra.mxu0 %v1696
    %1779 = vmatpush.xpose.msra.mxu0 %v1694
    %1780 = vmatpush.xpose.msra.mxu0 %v1692
    %1781 = vmatpush.xpose.msra.mxu0 %v1690
    %1782 = vmatpush.xpose.msra.mxu0 %v1688
    %1783 = vmatpush.xpose.msra.mxu0 %v1686
    %1784 = vmatpush.xpose.msra.mxu0 %v1684
    %1785 = vmatpush.xpose.msra.mxu0 %v1682
    %1786 = vmatpush.xpose.msra.mxu0 %v1680
    %1787 = vmatpush.xpose.msra.mxu0 %v1678
    %1788 = vmatpush.xpose.msra.mxu0 %v1676
    %1789 = vmatpush.xpose.msra.mxu0 %v1674
    %1790 = vmatpush.xpose.msra.mxu0 %v1672
    %1791 = vmatpush.xpose.msra.mxu0 %v1670
    %1792 = vmatpush.xpose.msra.mxu0 %v1668
    %1793 = vmatpush.xpose.msra.mxu0 %v1666
    %1794 = vmatmul.f32.gmra.mxu0 %v1734
    %v1795 = vpop.f32.mrf.mxu0
    %v1796 = vadd.f32 %v1732, %v1795
    %1797 = vdwg.mxu0
    %1798 = vmatpush.xpose.msra.mxu0 %v1697
    %1799 = vmatpush.xpose.msra.mxu0 %v1695
    %1800 = vmatpush.xpose.msra.mxu0 %v1693
    %1801 = vmatpush.xpose.msra.mxu0 %v1691
    %1802 = vmatpush.xpose.msra.mxu0 %v1689
    %1803 = vmatpush.xpose.msra.mxu0 %v1687
    %1804 = vmatpush.xpose.msra.mxu0 %v1685
    %1805 = vmatpush.xpose.msra.mxu0 %v1683
    %1806 = vmatpush.xpose.msra.mxu0 %v1681
    %1807 = vmatpush.xpose.msra.mxu0 %v1679
    %1808 = vmatpush.xpose.msra.mxu0 %v1677
    %1809 = vmatpush.xpose.msra.mxu0 %v1675
    %1810 = vmatpush.xpose.msra.mxu0 %v1673
    %1811 = vmatpush.xpose.msra.mxu0 %v1671
    %1812 = vmatpush.xpose.msra.mxu0 %v1669
    %1813 = vmatpush.xpose.msra.mxu0 %v1667
    %1814 = vmatmul.f32.gmra.mxu0 %v1735
    %v1815 = vpop.f32.mrf.mxu0
    %v1816 = vadd.f32 %v1796, %v1815
    %1817 = vdwg.mxu0
    %1818 = vmatpush.xpose.msra.mxu0 %v1728
    %1819 = vmatpush.xpose.msra.mxu0 %v1726
    %1820 = vmatpush.xpose.msra.mxu0 %v1724
    %1821 = vmatpush.xpose.msra.mxu0 %v1722
    %1822 = vmatpush.xpose.msra.mxu0 %v1720
    %1823 = vmatpush.xpose.msra.mxu0 %v1718
    %1824 = vmatpush.xpose.msra.mxu0 %v1716
    %1825 = vmatpush.xpose.msra.mxu0 %v1714
    %1826 = vmatpush.xpose.msra.mxu0 %v1712
    %1827 = vmatpush.xpose.msra.mxu0 %v1710
    %1828 = vmatpush.xpose.msra.mxu0 %v1708
    %1829 = vmatpush.xpose.msra.mxu0 %v1706
    %1830 = vmatpush.xpose.msra.mxu0 %v1704
    %1831 = vmatpush.xpose.msra.mxu0 %v1702
    %1832 = vmatpush.xpose.msra.mxu0 %v1700
    %1833 = vmatpush.xpose.msra.mxu0 %v1698
    %1834 = vmatmul.f32.gmra.mxu0 %v1734
    %v1835 = vpop.f32.mrf.mxu0
    %v1836 = vadd.f32 %v1732, %v1835
    %1837 = vdwg.mxu0
    %1838 = vmatpush.xpose.msra.mxu0 %v1729
    %1839 = vmatpush.xpose.msra.mxu0 %v1727
    %1840 = vmatpush.xpose.msra.mxu0 %v1725
    %1841 = vmatpush.xpose.msra.mxu0 %v1723
    %1842 = vmatpush.xpose.msra.mxu0 %v1721
    %1843 = vmatpush.xpose.msra.mxu0 %v1719
    %1844 = vmatpush.xpose.msra.mxu0 %v1717
    %1845 = vmatpush.xpose.msra.mxu0 %v1715
    %1846 = vmatpush.xpose.msra.mxu0 %v1713
    %1847 = vmatpush.xpose.msra.mxu0 %v1711
    %1848 = vmatpush.xpose.msra.mxu0 %v1709
    %1849 = vmatpush.xpose.msra.mxu0 %v1707
    %1850 = vmatpush.xpose.msra.mxu0 %v1705
    %1851 = vmatpush.xpose.msra.mxu0 %v1703
    %1852 = vmatpush.xpose.msra.mxu0 %v1701
    %1853 = vmatpush.xpose.msra.mxu0 %v1699
    %1854 = vmatmul.f32.gmra.mxu0 %v1735
    %v1855 = vpop.f32.mrf.mxu0
    %v1856 = vadd.f32 %v1836, %v1855
    %1857 = vdwg.mxu0
    %v1858 = vlaneseq
    %v1859 = vand.u32 %v1858, 127
    %v1860 = vadd.s32 %v1859, 128
    %v1861 = vadd.s32 %v1859, 256
    %v1862 = vadd.s32 %v123, %v1859
    %v1863 = vadd.s32 %v123, %v1860
    %v1864 = vadd.s32 %v123, %v1861
    %vm1865 = vcmp.lt.s32.totalorder %v1862, 300
    %vm1866 = vcmp.lt.s32.totalorder %v1863, 300
    %vm1867 = vcmp.lt.s32.totalorder %v1864, 300
    %v1868 = vsel %vm1865, %v1776, -inf
    %v1869 = vsel %vm1866, %v1816, -inf
    %v1870 = vsel %vm1867, %v1856, -inf
    %v1871 = vxor.u32 %v1868, 2147483648
    %v1872 = vxor.u32 %v1869, 2147483648
    %v1873 = vxor.u32 %v1870, 2147483648
    %v1874 = vmul.f32 %v1871, 1.442695
    %v1875 = vpow.pop %v1874
    %v1876 = vmul.f32 %v1872, 1.442695
    %v1877 = vpow.pop %v1876
    %v1878 = vmul.f32 %v1873, 1.442695
    %v1879 = vpow.pop %v1878
    %v1880 = vadd.f32 %v1875, 1.0
    %v1881 = vadd.f32 %v1877, 1.0
    %v1882 = vadd.f32 %v1879, 1.0
    %v1883 = vrcp.pop %v1880
    %v1884 = vmul.f32 %v1880, %v1883
    %v1885 = vsub.f32 1.0, %v1884
    %v1886 = vmul.f32 %v1883, %v1885
    %v1887 = vadd.f32 %v1883, %v1886
    %vm1888 = vweird.f32 %v1880
    %vm1889 = vweird.f32 %v1883
    %vm1890 = vmor %vm1888, %vm1889
    %v1891 = vsel %vm1890, %v1883, %v1887
    %v1892 = vand.u32 2147483647, %v1880
    %vm1893 = vcmp.eq.f32.partialorder %v1892, 8.507059e+37
    %v1894 = vand.u32 %v1880, 2147483648
    %v1895 = vor.u32 1.1754944e-38, %v1894
    %v1896 = vsel %vm1893, %v1895, %v1891
    %v1897 = vmul.f32 1.0, %v1896
    %v1898 = vrcp.pop %v1881
    %v1899 = vmul.f32 %v1881, %v1898
    %v1900 = vsub.f32 1.0, %v1899
    %v1901 = vmul.f32 %v1898, %v1900
    %v1902 = vadd.f32 %v1898, %v1901
    %vm1903 = vweird.f32 %v1881
    %vm1904 = vweird.f32 %v1898
    %vm1905 = vmor %vm1903, %vm1904
    %v1906 = vsel %vm1905, %v1898, %v1902
    %v1907 = vand.u32 2147483647, %v1881
    %vm1908 = vcmp.eq.f32.partialorder %v1907, 8.507059e+37
    %v1909 = vand.u32 %v1881, 2147483648
    %v1910 = vor.u32 1.1754944e-38, %v1909
    %v1911 = vsel %vm1908, %v1910, %v1906
    %v1912 = vmul.f32 1.0, %v1911
    %v1913 = vrcp.pop %v1882
    %v1914 = vmul.f32 %v1882, %v1913
    %v1915 = vsub.f32 1.0, %v1914
    %v1916 = vmul.f32 %v1913, %v1915
    %v1917 = vadd.f32 %v1913, %v1916
    %vm1918 = vweird.f32 %v1882
    %vm1919 = vweird.f32 %v1913
    %vm1920 = vmor %vm1918, %vm1919
    %v1921 = vsel %vm1920, %v1913, %v1917
    %v1922 = vand.u32 2147483647, %v1882
    %vm1923 = vcmp.eq.f32.partialorder %v1922, 8.507059e+37
    %v1924 = vand.u32 %v1882, 2147483648
    %v1925 = vor.u32 1.1754944e-38, %v1924
    %v1926 = vsel %vm1923, %v1925, %v1921
    %v1927 = vmul.f32 1.0, %v1926
    %v1931 = vrot.slane %v1912, 7
    %v1932 = vrot.slane %v1927, 6
    %vm1933 = vcmask 1040384
    %v1934 = vsel %vm1933, %v1897, %v1931
    %vm1935 = vcmask 1041408
    %v1936 = vsel %vm1935, %v1934, %v1932
    %v1938 = vlaneseq
    %vm1939 = vcmp.ge.s32.totalorder %v1938, 0
    %vm1940 = vcmp.lt.s32.totalorder %v1938, 384
    %vm1941 = vmand %vm1939, %vm1940
    %1942 = vst.msk [vmem:[#allocation13] sm:$0x7] %vm1941, %v1936
    %v1943 = vld [vmem:[#allocation2] sm:$0x1]
    %v1944 = vsel %vm1933, %v1868, -inf
    %v1945 = vsel %vm1933, %v1869, -inf
    %v1946 = vsel %vm1933, %v1870, -inf
    %v1947 = vmax.f32 %v1944, %v1945
    %v1948 = vmax.f32 %v1947, %v1946
    %1949 = vmax.xlane.f32.xlu0 %v1948
    %v1950 = vpop.xlane.xlu0 %1949
    %v1951 = vmax.f32 %v1943, %v1950
    %v1952 = vsub.f32 %v1943, %v1951
    %v1953 = vmul.f32 %v1952, 1.442695
    %v1954 = vpow.pop %v1953
    %1956 = vset.pattern.permute.xlu0 0
    %1957 = vperm.xlu0 %1956, %v1951
    %v1958 = vpop.permute.xlu0 %1957
    %v1960 = vperm.slane %v1958, 0
    %v1961 = vsub.f32 %v1868, %v1960
    %v1962 = vsub.f32 %v1869, %v1960
    %v1963 = vsub.f32 %v1870, %v1960
    %v1964 = vmul.f32 %v1961, 1.442695
    %v1965 = vpow.pop %v1964
    %v1966 = vmul.f32 %v1962, 1.442695
    %v1967 = vpow.pop %v1966
    %v1968 = vmul.f32 %v1963, 1.442695
    %v1969 = vpow.pop %v1968
    %v1970 = vld [vmem:[#allocation3] sm:$0x1]
    %v1971 = vmul.f32 %v1954, %v1970
    %v1972 = vsel %vm1933, %v1965, 0.0
    %v1973 = vsel %vm1933, %v1967, 0.0
    %v1974 = vadd.f32 %v1972, %v1973
    %v1975 = vsel %vm1933, %v1969, 0.0
    %v1976 = vadd.f32 %v1974, %v1975
    %1977 = vadd.xlane.f32.xlu0 %v1976
    %v1978 = vpop.xlane.xlu0 %1977
    %v1979 = vadd.f32 %v1971, %v1978
    %vm1980 = vcmask 0
    %1981 = vst.msk [vmem:[#allocation3] sm:$0x1] %vm1980, %v1979
    %v1982 = vld [vmem:[#allocation4] sm:$0x1]
    %1984 = vset.pattern.permute.xlu0 0
    %1985 = vperm.xlu0 %1984, %v1954
    %v1986 = vpop.permute.xlu0 %1985
    %v1988 = vperm.slane %v1986, 0
    %v1989 = vmul.f32 %v1988, %v1982
    %1990 = vmatpush.msra.mxu0 %v379
    %1991 = vmatpush.msra.mxu0 %v378
    %1992 = vmatpush.msra.mxu0 %v377
    %1993 = vmatpush.msra.mxu0 %v376
    %1994 = vmatpush.msra.mxu0 %v375
    %1995 = vmatpush.msra.mxu0 %v374
    %1996 = vmatpush.msra.mxu0 %v373
    %1997 = vmatpush.msra.mxu0 %v372
    %1998 = vmatpush.msra.mxu0 %v371
    %1999 = vmatpush.msra.mxu0 %v370
    %2000 = vmatpush.msra.mxu0 %v369
    %2001 = vmatpush.msra.mxu0 %v368
    %2002 = vmatpush.msra.mxu0 %v367
    %2003 = vmatpush.msra.mxu0 %v366
    %2004 = vmatpush.msra.mxu0 %v365
    %2005 = vmatpush.msra.mxu0 %v364
    %2006 = vmatmul.f32.gmra.mxu0 %v1965
    %v2007 = vpop.f32.mrf.mxu0
    %v2008 = vadd.f32 0.0, %v2007
    %2009 = vdwg.mxu0
    %2010 = vmatpush.msra.mxu0 %v395
    %2011 = vmatpush.msra.mxu0 %v394
    %2012 = vmatpush.msra.mxu0 %v393
    %2013 = vmatpush.msra.mxu0 %v392
    %2014 = vmatpush.msra.mxu0 %v391
    %2015 = vmatpush.msra.mxu0 %v390
    %2016 = vmatpush.msra.mxu0 %v389
    %2017 = vmatpush.msra.mxu0 %v388
    %2018 = vmatpush.msra.mxu0 %v387
    %2019 = vmatpush.msra.mxu0 %v386
    %2020 = vmatpush.msra.mxu0 %v385
    %2021 = vmatpush.msra.mxu0 %v384
    %2022 = vmatpush.msra.mxu0 %v383
    %2023 = vmatpush.msra.mxu0 %v382
    %2024 = vmatpush.msra.mxu0 %v381
    %2025 = vmatpush.msra.mxu0 %v380
    %2026 = vmatmul.f32.gmra.mxu0 %v1967
    %v2027 = vpop.f32.mrf.mxu0
    %v2028 = vadd.f32 %v2008, %v2027
    %2029 = vdwg.mxu0
    %2030 = vmatpush.msra.mxu0 %v411
    %2031 = vmatpush.msra.mxu0 %v410
    %2032 = vmatpush.msra.mxu0 %v409
    %2033 = vmatpush.msra.mxu0 %v408
    %2034 = vmatpush.msra.mxu0 %v407
    %2035 = vmatpush.msra.mxu0 %v406
    %2036 = vmatpush.msra.mxu0 %v405
    %2037 = vmatpush.msra.mxu0 %v404
    %2038 = vmatpush.msra.mxu0 %v403
    %2039 = vmatpush.msra.mxu0 %v402
    %2040 = vmatpush.msra.mxu0 %v401
    %2041 = vmatpush.msra.mxu0 %v400
    %2042 = vmatpush.msra.mxu0 %v399
    %2043 = vmatpush.msra.mxu0 %v398
    %2044 = vmatpush.msra.mxu0 %v397
    %2045 = vmatpush.msra.mxu0 %v396
    %2046 = vmatmul.f32.gmra.mxu0 %v1969
    %v2047 = vpop.f32.mrf.mxu0
    %v2048 = vadd.f32 %v2028, %v2047
    %2049 = vdwg.mxu0
    %v2050 = vadd.f32 %v1989, %v2048
    %2051 = vst [vmem:[#allocation4] sm:$0x1] %v2050
    %2052 = vst.msk [vmem:[#allocation2] sm:$0x1] %vm1980, %v1951
    // Predicated region
    $region42: #{tpu_custom_call.1} parent=1 // pred_check
      %p2053 = pneg %p65
    $region43: #{tpu_custom_call.1} parent=1 // pred_check_branch
      %2055 = sbr.rel (%p2053) target = $region45
    $region44: #{tpu_custom_call.1} parent=1 // pred_region
      %v2056 = vld [vmem:[#allocation3] sm:$0x1]
      %v2057 = vrcp.pop %v2056
      %v2058 = vld [vmem:[#allocation4] sm:$0x1]
      %2060 = vset.pattern.permute.xlu0 0
      %2061 = vperm.xlu0 %2060, %v2057
      %v2062 = vpop.permute.xlu0 %2061
      %v2064 = vperm.slane %v2062, 0
      %v2065 = vmul.f32 %v2058, %v2064
      %v2066 = vld [vmem:[%s5] sm:$0xff]
      %v2067 = vld [vmem:[%s5 + $0x8] sm:$0xff]
      %v2068 = vld [vmem:[%s5 + $0x10] sm:$0xff]
      %v2069 = vld [vmem:[%s5 + $0x18] sm:$0xff]
      %v2070 = vld [vmem:[%s5 + $0x20] sm:$0xff]
      %v2071 = vld [vmem:[%s5 + $0x28] sm:$0xff]
      %v2072 = vld [vmem:[%s5 + $0x30] sm:$0xff]
      %v2073 = vld [vmem:[%s5 + $0x38] sm:$0xff]
      %v2074 = vld [vmem:[%s5 + $0x40] sm:$0xff]
      %v2075 = vld [vmem:[%s5 + $0x48] sm:$0xff]
      %v2076 = vld [vmem:[%s5 + $0x50] sm:$0xff]
      %v2077 = vld [vmem:[%s5 + $0x58] sm:$0xff]
      %v2078 = vld [vmem:[%s5 + $0x60] sm:$0xff]
      %v2079 = vld [vmem:[%s5 + $0x68] sm:$0xff]
      %v2080 = vld [vmem:[%s5 + $0x70] sm:$0xff]
      %v2081 = vld [vmem:[%s5 + $0x78] sm:$0xff]
      %v2082 = vld [vmem:[#allocation6] sm:$0x1]
      %2083 = vmatpush.msra.mxu0 %v2081
      %2084 = vmatpush.msra.mxu0 %v2080
      %2085 = vmatpush.msra.mxu0 %v2079
      %2086 = vmatpush.msra.mxu0 %v2078
      %2087 = vmatpush.msra.mxu0 %v2077
      %2088 = vmatpush.msra.mxu0 %v2076
      %2089 = vmatpush.msra.mxu0 %v2075
      %2090 = vmatpush.msra.mxu0 %v2074
      %2091 = vmatpush.msra.mxu0 %v2073
      %2092 = vmatpush.msra.mxu0 %v2072
      %2093 = vmatpush.msra.mxu0 %v2071
      %2094 = vmatpush.msra.mxu0 %v2070
      %2095 = vmatpush.msra.mxu0 %v2069
      %2096 = vmatpush.msra.mxu0 %v2068
      %2097 = vmatpush.msra.mxu0 %v2067
      %2098 = vmatpush.msra.mxu0 %v2066
      %2099 = vmatmul.f32.gmra.mxu0 %v2065
      %v2100 = vpop.f32.mrf.mxu0
      %v2101 = vadd.f32 %v2082, %v2100
      %2102 = vdwg.mxu0
      %v2103 = vxor.u32 %v2101, 2147483648
      %v2104 = vmul.f32 %v2103, 1.442695
      %v2105 = vpow.pop %v2104
      %v2106 = vadd.f32 %v2105, 1.0
      %v2107 = vrcp.pop %v2106
      %v2108 = vmul.f32 %v2106, %v2107
      %v2109 = vsub.f32 1.0, %v2108
      %v2110 = vmul.f32 %v2107, %v2109
      %v2111 = vadd.f32 %v2107, %v2110
      %vm2112 = vweird.f32 %v2106
      %vm2113 = vweird.f32 %v2107
      %vm2114 = vmor %vm2112, %vm2113
      %v2115 = vsel %vm2114, %v2107, %v2111
      %v2116 = vand.u32 2147483647, %v2106
      %vm2117 = vcmp.eq.f32.partialorder %v2116, 8.507059e+37
      %v2118 = vand.u32 %v2106, 2147483648
      %v2119 = vor.u32 1.1754944e-38, %v2118
      %v2120 = vsel %vm2117, %v2119, %v2115
      %v2121 = vmul.f32 1.0, %v2120
      %2122 = vst.msk [vmem:[#allocation12] sm:$0x1] %vm1980, %v2121
    $region45: #{tpu_custom_call.1} parent=1 // pred_fallthru
      _
    // Predicated region
    $region46: #{tpu_custom_call.1} parent=1 // pred_check
      _
    $region47: #{tpu_custom_call.1} parent=1 // pred_check_branch
      %2124 = sbr.rel (0) target = $region49
    $region48: #{tpu_custom_call.1} parent=1 // pred_region
      %2126 = vsyncadd [#allocation9], 0
      %s2128 = sshll.u32 [#allocation12], 4
      %s2129 = int_to_ptr.vmem [resolvable:$true] %s2128
      %s2130 = sshll.u32 %s7, 4
      %s2131 = int_to_ptr.hbm [resolvable:$true] %s2130
      %2133 = dma.vmem_to_hbm [thread:$0]  %s2129, 16, %s2131, [#allocation9]
    $region49: #{tpu_custom_call.1} parent=1 // pred_fallthru
      _
    // Predicated region
    $region50: #{tpu_custom_call.1} parent=1 // pred_check
      _
    $region51: #{tpu_custom_call.1} parent=1 // pred_check_branch
      %2135 = sbr.rel (0) target = $region53
    $region52: #{tpu_custom_call.1} parent=1 // pred_region
      %2137 = vsyncadd [#allocation14], 0
      %s2139 = sshll.u32 [#allocation13], 4
      %s2140 = int_to_ptr.vmem [resolvable:$true] %s2139
      %s2141 = sshll.u32 %s8, 4
      %s2142 = int_to_ptr.hbm [resolvable:$true] %s2141
      %2144 = dma.vmem_to_hbm [thread:$0]  %s2140, 48, %s2142, [#allocation14]
    $region53: #{tpu_custom_call.1} parent=1 // pred_fallthru
      _
    // Predicated region
    $region54: #{tpu_custom_call.1} parent=1 // pred_check
      _
    $region55: #{tpu_custom_call.1} parent=1 // pred_check_branch
      %2146 = sbr.rel (0) target = $region57
    $region56: #{tpu_custom_call.1} parent=1 // pred_region
      %2148 = dma.done [#allocation9], 16
    $region57: #{tpu_custom_call.1} parent=1 // pred_fallthru
      _
    // Predicated region
    $region58: #{tpu_custom_call.1} parent=1 // pred_check
      _
    $region59: #{tpu_custom_call.1} parent=1 // pred_check_branch
      %2150 = sbr.rel (0) target = $region61
    $region60: #{tpu_custom_call.1} parent=1 // pred_region
      %2152 = dma.done [#allocation14], 48
    $region61: #{tpu_custom_call.1} parent=1 // pred_fallthru
      _
    %2153 = vsyncpa [#allocation8], 1
    %2154 = vsyncpa [#allocation11], 1
    %2155 = vsyncpa [#allocation9], 1
    %2156 = vsyncpa [#allocation14], 1

</llo_original>
